<compile_context>
chip_gen: v6e
topology: v6e:2x2x1
jax: 0.10.0
libtpu: 0.0.40
codegen_flags: <defaults>
</compile_context>

<pallas_src>
import functools

import jax
import jax.numpy as jnp
from jax.experimental import pallas as pl
from jax.experimental.pallas import tpu as pltpu


def _round_up(x, m):
    return (x + m - 1) // m * m


# ----------------------------------------------------------------------------
# Pallas kernel
# ----------------------------------------------------------------------------
def make_iaf_kernel(depth, nblocks, P, dim, compute_dtype):
    """Kernel refs: (x, vecs, hidden_w, head_w, lin_w, y_out).

    vecs  : (n_vec, P) f32 stacked rows:
            [0] actnorm0 bias   [1] actnorm0 scale (= exp(logs), zero-padded)
            per block: depth hidden biases, bm, bs (padding lanes = +30),
                       fused (linear+ActNorm) bias
    hidden_w : (nblocks*depth, P, P)  pre-masked, zero-padded MADE hidden weights
    head_w   : (nblocks, P, 2P)       fused [Wm | Ws], pre-masked, zero-padded
    lin_w    : (nblocks, P, P)        InvertibleLinear weights with the trailing
                                      ActNorm scale folded into the columns
    All sample-independent logdet terms are added in the wrapper.
    The per-sample logdet is stashed in padding lane `dim` of the single output.
    """
    n_vec_per_block = depth + 3

    def kernel(x_ref, vecs_ref, hidden_w_ref, head_w_ref, lin_w_ref, y_ref):
        h = x_ref[...].astype(jnp.float32)            # (TB, P), padded lanes are 0

        def vec(i):                                   # (1, P) f32 row, loaded per use
            return vecs_ref[i:i + 1, :]

        # --- ActNorm 0 (scale precomputed; constant logdet added outside) ----
        h = (h + vec(0)) * vec(1)

        ld = jnp.zeros((h.shape[0], 1), jnp.float32)

        for blk in range(nblocks):
            base = 2 + blk * n_vec_per_block

            # --- IAFTemplate: masked (MADE) MLP producing (m, s) -------------
            a = h
            for l in range(depth):
                w = hidden_w_ref[blk * depth + l]              # (P, P)
                pre = jnp.dot(a.astype(compute_dtype), w,
                              preferred_element_type=jnp.float32)
                a = jnp.tanh(pre + vec(base + l))

            hw = head_w_ref[blk]                               # (P, 2P) = [Wm|Ws]
            ms = jnp.dot(a.astype(compute_dtype), hw,
                         preferred_element_type=jnp.float32)   # (TB, 2P)
            m = ms[:, :P] + vec(base + depth)
            s = ms[:, P:] + vec(base + depth + 1)              # padding lanes: +30

            # Shared exp(-|s|): sigma and log(sigma) from one EUP exp.
            #   s >= 0: sigma = 1/(1+e)      ; log_sigma = -log(1+e)
            #   s <  0: sigma = e/(1+e)      ; log_sigma = s - log(1+e)
            e = jnp.exp(-jnp.abs(s))
            r = 1.0 / (1.0 + e)
            sigma = jnp.where(s >= 0.0, r, e * r)
            log_sigma = jnp.minimum(s, 0.0) - jnp.log(1.0 + e)

            h = sigma * h + (1.0 - sigma) * m
            # padding lanes contribute exactly 0 (sigmoid(30) == 1.0 in f32)
            ld = ld + jnp.sum(log_sigma, axis=-1, keepdims=True)

            # --- InvertibleLinear with the block's trailing ActNorm folded in:
            #     h = h @ (W * exp(logs)) + (b * exp(logs))
            lw = lin_w_ref[blk]                                # (P, P)
            h = jnp.dot(h.astype(compute_dtype), lw,
                        preferred_element_type=jnp.float32) + vec(base + depth + 2)

        # Single lane-dense output: z in lanes [0, dim), per-sample logdet in
        # padding lane `dim` (dim < P by construction in pack_params).
        lane = jax.lax.broadcasted_iota(jnp.int32, h.shape, 1)
        y_ref[...] = jnp.where(lane == dim, ld, h).astype(y_ref.dtype)

    return kernel


def iaf_forward(x, packed, *, dim, n_neurons, depth, nblocks, tb=256,
                compute_dtype=jnp.float32):
    """x: (B, dim) float32. Returns (z (B, dim), logdet (B,))."""
    vecs, hidden_w, head_w, lin_w, const_logdet = packed
    P = vecs.shape[1]
    B = x.shape[0]
    B_pad = _round_up(max(B, tb), tb)

    # TODO(synk): at very large B, pass x/y as (B, dim) and pad to 128 lanes inside
    # the kernel instead of inflating HBM traffic 16x; negligible at this size.
    xp = jnp.zeros((B_pad, P), jnp.float32).at[:B, :dim].set(
        x.astype(jnp.float32))

    # Cast MXU operands once in the wrapper (halves weight DMA bytes for bf16;
    # bf16 is the fast path on v5e/v6e/v7x alike). Bias rows stay f32.
    hw_c = hidden_w.astype(compute_dtype)
    hd_c = head_w.astype(compute_dtype)
    lw_c = lin_w.astype(compute_dtype)

    kernel = make_iaf_kernel(depth, nblocks, P, dim, compute_dtype)

    in_specs = [
        pl.BlockSpec((tb, P), lambda i: (i, 0)),
        pl.BlockSpec(vecs.shape, lambda i: (0, 0)),           # grid-invariant
        pl.BlockSpec(hw_c.shape, lambda i: (0, 0, 0)),
        pl.BlockSpec(hd_c.shape, lambda i: (0, 0, 0)),
        pl.BlockSpec(lw_c.shape, lambda i: (0, 0, 0)),
    ]
    out_specs = pl.BlockSpec((tb, P), lambda i: (i, 0))

    # Advisory cost estimate for XLA scheduling.
    mm_flops_row = 2 * P * P * (depth + 1) + 2 * P * (2 * P)
    flops = int(B_pad * nblocks * mm_flops_row)
    transc = int(B_pad * nblocks * (depth + 3) * P)
    itemsz = jnp.dtype(compute_dtype).itemsize
    bytes_acc = int(xp.size * 4 + vecs.size * 4
                    + (hw_c.size + hd_c.size + lw_c.size) * itemsz
                    + B_pad * P * 4)

    y = pl.pallas_call(
        kernel,
        out_shape=jax.ShapeDtypeStruct((B_pad, P), jnp.float32),
        grid_spec=pltpu.PrefetchScalarGridSpec(
            num_scalar_prefetch=0,
            grid=(B_pad // tb,),
            in_specs=in_specs,
            out_specs=out_specs,
        ),
        # NOTE: for large dim/n_neurons/nblocks on v7x (64 MiB VMEM) single-buffer
        # the grid-invariant weights (pipeline_mode=pl.Buffered(1)) or grid over
        # the block index with an "arbitrary" axis and per-block weight index_maps.
        compiler_params=pltpu.CompilerParams(
            dimension_semantics=("parallel",),
            vmem_limit_bytes=32 * 1024 * 1024),
        cost_estimate=pl.CostEstimate(
            flops=flops, transcendentals=transc, bytes_accessed=bytes_acc),
    )(xp, vecs, hw_c, hd_c, lw_c)

    z = y[:B, :dim]
    logdet = y[:B, dim] + const_logdet
    return z, logdet


# ----------------------------------------------------------------------------
# Parameter construction (deterministic, synthetic) + MADE masks
# ----------------------------------------------------------------------------
def made_masks(dim, n_neurons, depth):
    deg_in = jnp.arange(1, dim + 1)
    degs = [deg_in]
    for _ in range(depth):
        if dim > 1:
            degs.append(jnp.arange(n_neurons) % (dim - 1) + 1)
        else:
            degs.append(jnp.ones((n_neurons,), jnp.int32))
    hidden_masks = []
    for l in range(depth):
        prev, cur = degs[l], degs[l + 1]
        hidden_masks.append((cur[None, :] >= prev[:, None]).astype(jnp.float32))
    deg_out = jnp.arange(1, dim + 1)
    out_mask = (deg_out[None, :] > degs[-1][:, None]).astype(jnp.float32)
    return hidden_masks, out_mask


def build_params(key, dim, n_neurons, depth, nblocks):
    keys = iter(jax.random.split(key, 16 + nblocks * (4 * depth + 32)))
    nxt = lambda: next(keys)
    hidden_masks, out_mask = made_masks(dim, n_neurons, depth)

    params = []
    # ActNorm 0
    params.append(0.05 * jax.random.normal(nxt(), (1, dim), jnp.float32))
    params.append(0.05 * jax.random.normal(nxt(), (1, dim), jnp.float32))
    for _ in range(nblocks):
        fan_in = dim
        for l in range(depth):
            w = 0.2 * jax.random.normal(nxt(), (fan_in, n_neurons), jnp.float32)
            params.append(w * hidden_masks[l])
            params.append(0.01 * jax.random.normal(nxt(), (1, n_neurons), jnp.float32))
            fan_in = n_neurons
        wm = 0.2 * jax.random.normal(nxt(), (n_neurons, dim), jnp.float32)
        ws = 0.2 * jax.random.normal(nxt(), (n_neurons, dim), jnp.float32)
        params.append(wm * out_mask)
        params.append(jnp.zeros((1, dim), jnp.float32))
        params.append(ws * out_mask)
        params.append(0.1 * jax.random.normal(nxt(), (1, dim), jnp.float32))
        linw = jnp.eye(dim, dtype=jnp.float32) + 0.05 * jax.random.normal(
            nxt(), (dim, dim), jnp.float32)
        params.append(linw)
        params.append(jnp.linalg.slogdet(linw)[1].reshape(1, 1).astype(jnp.float32))
        params.append(0.05 * jax.random.normal(nxt(), (1, dim), jnp.float32))
        params.append(0.05 * jax.random.normal(nxt(), (1, dim), jnp.float32))
    return params


def pack_params(params, *, dim, n_neurons, depth, nblocks):
    """Pad to a single lane width P (>=128, with at least one padding lane for the
    in-band logdet) and pack into 4 stacked arrays plus a constant
    (sample-independent) logdet scalar."""
    # dim+1 guarantees lane `dim` is padding (used to carry the per-sample logdet).
    P = max(_round_up(dim + 1, 128), _round_up(n_neurons, 128))
    idx = [0]

    def take():
        p = params[idx[0]]
        idx[0] += 1
        return jnp.asarray(p, jnp.float32)

    def pad_vec(v, fill=0.0):
        return jnp.full((P,), fill, jnp.float32).at[:v.shape[-1]].set(
            jnp.asarray(v, jnp.float32).reshape(-1))

    def pad_mat(m, rows, cols):
        m = jnp.asarray(m, jnp.float32)
        return jnp.zeros((rows, cols), jnp.float32).at[
            :m.shape[0], :m.shape[1]].set(m)

    vec_rows = []
    const_logdet = jnp.zeros((), jnp.float32)

    an0_b, an0_logs = take(), take()
    vec_rows.append(pad_vec(an0_b))
    vec_rows.append(pad_vec(jnp.exp(an0_logs)))              # padded scale = 0
    const_logdet = const_logdet + jnp.sum(an0_logs)

    hidden_ws, head_ws, lin_ws = [], [], []
    for _ in range(nblocks):
        for _l in range(depth):
            w, b = take(), take()
            hidden_ws.append(pad_mat(w, P, P))
            vec_rows.append(pad_vec(b))
        wm, bm, ws_, bs = take(), take(), take(), take()
        hw = jnp.zeros((P, 2 * P), jnp.float32)
        hw = hw.at[:n_neurons, :dim].set(wm)
        hw = hw.at[:n_neurons, P:P + dim].set(ws_)
        head_ws.append(hw)
        vec_rows.append(pad_vec(bm))
        # Padding lanes of bs = +30: sigmoid saturates to exactly 1.0 in f32 there,
        # so padded h lanes stay exactly 0 and log(sigma)=0 -> no lane mask needed.
        vec_rows.append(pad_vec(bs, fill=30.0))
        linw, lin_ld = take(), take()
        an_b, an_logs = take(), take()
        # Fold the block's trailing ActNorm into the linear:
        #   ((x@W)+b)*exp(logs) = x@(W*exp(logs)) + b*exp(logs)
        scale = jnp.exp(an_logs).reshape(-1)                 # (dim,)
        lin_ws.append(pad_mat(linw * scale[None, :], P, P))
        vec_rows.append(pad_vec(an_b.reshape(-1) * scale))
        const_logdet = const_logdet + lin_ld[0, 0] + jnp.sum(an_logs)

    vecs = jnp.stack(vec_rows, axis=0)                       # (n_vec, P)
    hidden_w = jnp.stack(hidden_ws, axis=0)                  # (nblocks*depth, P, P)
    head_w = jnp.stack(head_ws, axis=0)                      # (nblocks, P, 2P)
    lin_w = jnp.stack(lin_ws, axis=0)                        # (nblocks, P, P)
    return vecs, hidden_w, head_w, lin_w, const_logdet


# ----------------------------------------------------------------------------
# Pure-JAX reference (same math, unpacked params) for a correctness check
# ----------------------------------------------------------------------------
def iaf_reference(x, params, *, dim, depth, nblocks):
    idx = [0]

    def take():
        p = params[idx[0]]
        idx[0] += 1
        return p

    dot = functools.partial(jnp.dot, precision=jax.lax.Precision.HIGHEST)
    h = x
    b0, logs0 = take(), take()
    h = (h + b0) * jnp.exp(logs0)
    ld = jnp.zeros((x.shape[0],), jnp.float32) + jnp.sum(logs0)
    for _ in range(nblocks):
        a = h
        for _ in range(depth):
            w, b = take(), take()
            a = jnp.tanh(dot(a, w) + b)
        wm, bm, ws, bs = take(), take(), take(), take()
        m = dot(a, wm) + bm
        s = dot(a, ws) + bs
        sigma = jax.nn.sigmoid(s)
        h = sigma * h + (1.0 - sigma) * m
        ld = ld + jnp.sum(jnp.log(sigma), axis=-1)
        linw, lin_ld = take(), take()
        h = dot(h, linw)
        ld = ld + lin_ld[0, 0]
        ab, alogs = take(), take()
        h = (h + ab) * jnp.exp(alogs)
        ld = ld + jnp.sum(alogs)
    return h, ld


# ----------------------------------------------------------------------------
if __name__ == "__main__":
    DIM, N_NEURONS, DEPTH, NBLOCKS = 8, 32, 2, 1
    BATCH, TB = 512, 256            # grid = 2 steps; B_pad = 2*TB keeps both v7x TCs busy

    key = jax.random.PRNGKey(0)
    kx, kp = jax.random.split(key)
    x = jax.random.normal(kx, (BATCH, DIM), jnp.float32)
    params = build_params(kp, DIM, N_NEURONS, DEPTH, NBLOCKS)
    packed = pack_params(params, dim=DIM, n_neurons=N_NEURONS,
                         depth=DEPTH, nblocks=NBLOCKS)

    # f32 MXU path (tight tolerance, all chips)
    z, logdet = iaf_forward(x, packed, dim=DIM, n_neurons=N_NEURONS, depth=DEPTH,
                            nblocks=NBLOCKS, tb=TB, compute_dtype=jnp.float32)
    jax.block_until_ready((z, logdet))

    z_ref, ld_ref = iaf_reference(x, params, dim=DIM, depth=DEPTH, nblocks=NBLOCKS)
    assert z.shape == (BATCH, DIM) and logdet.shape == (BATCH,)
    assert jnp.allclose(z, z_ref, atol=1e-3, rtol=1e-3)
    assert jnp.allclose(logdet, ld_ref, atol=1e-3, rtol=1e-3)

    # bf16 MXU path (fast path on v5e/v6e/v7x): bf16 operands, f32 accumulation.
    z16, ld16 = iaf_forward(x, packed, dim=DIM, n_neurons=N_NEURONS, depth=DEPTH,
                            nblocks=NBLOCKS, tb=TB, compute_dtype=jnp.bfloat16)
    jax.block_until_ready((z16, ld16))
    assert jnp.allclose(z16, z_ref, atol=2e-1, rtol=2e-1)
    assert jnp.allclose(ld16, ld_ref, atol=2e-1, rtol=2e-1)

    # TODO(synk): original ActNorm has data-dependent init on the first forward
    # (stateful); here parameters are fixed synthetic values instead.
    print("KERNEL_OK")
</pallas_src>

<mosaic_0001>
module attributes {stable_mosaic.version = 11 : i64} {
  func.func @kernel(%arg0: i32, %arg1: memref<256x128xf32, #tpu.memory_space<vmem>>, %arg2: memref<7x128xf32, #tpu.memory_space<vmem>>, %arg3: memref<2x128x128xf32, #tpu.memory_space<vmem>>, %arg4: memref<1x128x256xf32, #tpu.memory_space<vmem>>, %arg5: memref<1x128x128xf32, #tpu.memory_space<vmem>>, %arg6: memref<256x128xf32, #tpu.memory_space<vmem>>) attributes {dimension_semantics = [#tpu.dimension_semantics<parallel>], iteration_bounds = array<i64: 2>, scalar_prefetch = 0 : i64, scratch_operands = 0 : i64, tpu.core_type = #tpu.core_type<tc>, window_params = [{transform_indices = @transform_0, window_bounds = array<i64: 256, 128>}, {pipeline_mode = #tpu.pipeline_mode<synchronous>, transform_indices = @transform_1, window_bounds = array<i64: 7, 128>}, {pipeline_mode = #tpu.pipeline_mode<synchronous>, transform_indices = @transform_2, window_bounds = array<i64: 2, 128, 128>}, {pipeline_mode = #tpu.pipeline_mode<synchronous>, transform_indices = @transform_3, window_bounds = array<i64: 1, 128, 256>}, {pipeline_mode = #tpu.pipeline_mode<synchronous>, transform_indices = @transform_4, window_bounds = array<i64: 1, 128, 128>}, {transform_indices = @transform_5, window_bounds = array<i64: 256, 128>}]} {
    %c0 = arith.constant 0 : index
    %c0_0 = arith.constant 0 : index
    %0 = vector.load %arg1[%c0, %c0_0] : memref<256x128xf32, #tpu.memory_space<vmem>>, vector<256x128xf32>
    %c0_1 = arith.constant 0 : index
    %c0_2 = arith.constant 0 : index
    %1 = vector.load %arg2[%c0_1, %c0_2] : memref<7x128xf32, #tpu.memory_space<vmem>>, vector<1x128xf32>
    %2 = vector.broadcast %1 : vector<1x128xf32> to vector<256x128xf32>
    %3 = arith.addf %0, %2 : vector<256x128xf32>
    %c1 = arith.constant 1 : index
    %c0_3 = arith.constant 0 : index
    %4 = vector.load %arg2[%c1, %c0_3] : memref<7x128xf32, #tpu.memory_space<vmem>>, vector<1x128xf32>
    %5 = vector.broadcast %4 : vector<1x128xf32> to vector<256x128xf32>
    %6 = arith.mulf %3, %5 : vector<256x128xf32>
    %cst = arith.constant 0.000000e+00 : f32
    %7 = vector.broadcast %cst : f32 to vector<256x1xf32>
    %c0_4 = arith.constant 0 : index
    %c0_5 = arith.constant 0 : index
    %c0_6 = arith.constant 0 : index
    %8 = vector.load %arg3[%c0_4, %c0_5, %c0_6] : memref<2x128x128xf32, #tpu.memory_space<vmem>>, vector<1x128x128xf32>
    %9 = vector.shape_cast %8 : vector<1x128x128xf32> to vector<128x128xf32>
    %cst_7 = arith.constant dense<0.000000e+00> : vector<256x128xf32>
    %10 = tpu.matmul %6, %9, %cst_7 {dimension_numbers = #tpu.dot_dimension_numbers<[1], [0], [0], [1], [0, 0, 1, 1], [], []>} : vector<256x128xf32>, vector<128x128xf32>, vector<256x128xf32> -> vector<256x128xf32>
    %c2 = arith.constant 2 : index
    %c0_8 = arith.constant 0 : index
    %11 = vector.load %arg2[%c2, %c0_8] : memref<7x128xf32, #tpu.memory_space<vmem>>, vector<1x128xf32>
    %12 = vector.broadcast %11 : vector<1x128xf32> to vector<256x128xf32>
    %13 = arith.addf %10, %12 : vector<256x128xf32>
    %14 = math.tanh %13 : vector<256x128xf32>
    %c1_9 = arith.constant 1 : index
    %c0_10 = arith.constant 0 : index
    %c0_11 = arith.constant 0 : index
    %15 = vector.load %arg3[%c1_9, %c0_10, %c0_11] : memref<2x128x128xf32, #tpu.memory_space<vmem>>, vector<1x128x128xf32>
    %16 = vector.shape_cast %15 : vector<1x128x128xf32> to vector<128x128xf32>
    %cst_12 = arith.constant dense<0.000000e+00> : vector<256x128xf32>
    %17 = tpu.matmul %14, %16, %cst_12 {dimension_numbers = #tpu.dot_dimension_numbers<[1], [0], [0], [1], [0, 0, 1, 1], [], []>} : vector<256x128xf32>, vector<128x128xf32>, vector<256x128xf32> -> vector<256x128xf32>
    %c3 = arith.constant 3 : index
    %c0_13 = arith.constant 0 : index
    %18 = vector.load %arg2[%c3, %c0_13] : memref<7x128xf32, #tpu.memory_space<vmem>>, vector<1x128xf32>
    %19 = vector.broadcast %18 : vector<1x128xf32> to vector<256x128xf32>
    %20 = arith.addf %17, %19 : vector<256x128xf32>
    %21 = math.tanh %20 : vector<256x128xf32>
    %c0_14 = arith.constant 0 : index
    %c0_15 = arith.constant 0 : index
    %c0_16 = arith.constant 0 : index
    %22 = vector.load %arg4[%c0_14, %c0_15, %c0_16] : memref<1x128x256xf32, #tpu.memory_space<vmem>>, vector<1x128x256xf32>
    %23 = vector.shape_cast %22 : vector<1x128x256xf32> to vector<128x256xf32>
    %cst_17 = arith.constant dense<0.000000e+00> : vector<256x256xf32>
    %24 = tpu.matmul %21, %23, %cst_17 {dimension_numbers = #tpu.dot_dimension_numbers<[1], [0], [0], [1], [0, 0, 1, 1], [], []>} : vector<256x128xf32>, vector<128x256xf32>, vector<256x256xf32> -> vector<256x256xf32>
    %25 = vector.extract_strided_slice %24 {offsets = [0, 0], sizes = [256, 128], strides = [1, 1]} : vector<256x256xf32> to vector<256x128xf32>
    %c4 = arith.constant 4 : index
    %c0_18 = arith.constant 0 : index
    %26 = vector.load %arg2[%c4, %c0_18] : memref<7x128xf32, #tpu.memory_space<vmem>>, vector<1x128xf32>
    %27 = vector.broadcast %26 : vector<1x128xf32> to vector<256x128xf32>
    %28 = arith.addf %25, %27 : vector<256x128xf32>
    %29 = vector.extract_strided_slice %24 {offsets = [0, 128], sizes = [256, 128], strides = [1, 1]} : vector<256x256xf32> to vector<256x128xf32>
    %c5 = arith.constant 5 : index
    %c0_19 = arith.constant 0 : index
    %30 = vector.load %arg2[%c5, %c0_19] : memref<7x128xf32, #tpu.memory_space<vmem>>, vector<1x128xf32>
    %31 = vector.broadcast %30 : vector<1x128xf32> to vector<256x128xf32>
    %32 = arith.addf %29, %31 : vector<256x128xf32>
    %33 = math.absf %32 : vector<256x128xf32>
    %cst_20 = arith.constant 0.000000e+00 : f32
    %34 = vector.broadcast %cst_20 : f32 to vector<256x128xf32>
    %35 = arith.subf %34, %33 : vector<256x128xf32>
    %36 = math.exp %35 : vector<256x128xf32>
    %cst_21 = arith.constant 1.000000e+00 : f32
    %37 = vector.broadcast %cst_21 : f32 to vector<256x128xf32>
    %38 = arith.addf %37, %36 : vector<256x128xf32>
    %cst_22 = arith.constant 1.000000e+00 : f32
    %39 = vector.broadcast %cst_22 : f32 to vector<256x128xf32>
    %40 = arith.divf %39, %38 : vector<256x128xf32>
    %cst_23 = arith.constant 0.000000e+00 : f32
    %41 = vector.broadcast %cst_23 : f32 to vector<256x128xf32>
    %42 = arith.cmpf oge, %32, %41 : vector<256x128xf32>
    %43 = arith.mulf %36, %40 : vector<256x128xf32>
    %44 = arith.select %42, %40, %43 : vector<256x128xi1>, vector<256x128xf32>
    %cst_24 = arith.constant 0.000000e+00 : f32
    %45 = vector.broadcast %cst_24 : f32 to vector<256x128xf32>
    %46 = arith.minimumf %32, %45 : vector<256x128xf32>
    %cst_25 = arith.constant 1.000000e+00 : f32
    %47 = vector.broadcast %cst_25 : f32 to vector<256x128xf32>
    %48 = arith.addf %47, %36 : vector<256x128xf32>
    %49 = math.log %48 : vector<256x128xf32>
    %50 = arith.subf %46, %49 : vector<256x128xf32>
    %51 = arith.mulf %44, %6 : vector<256x128xf32>
    %cst_26 = arith.constant 1.000000e+00 : f32
    %52 = vector.broadcast %cst_26 : f32 to vector<256x128xf32>
    %53 = arith.subf %52, %44 : vector<256x128xf32>
    %54 = arith.mulf %53, %28 : vector<256x128xf32>
    %55 = arith.addf %51, %54 : vector<256x128xf32>
    %cst_27 = arith.constant dense<0.000000e+00> : vector<256xf32>
    %56 = vector.multi_reduction <add>, %50, %cst_27 [1] : vector<256x128xf32> to vector<256xf32>
    %57 = vector.shape_cast %56 : vector<256xf32> to vector<256x1xf32>
    %58 = arith.addf %7, %57 : vector<256x1xf32>
    %c0_28 = arith.constant 0 : index
    %c0_29 = arith.constant 0 : index
    %c0_30 = arith.constant 0 : index
    %59 = vector.load %arg5[%c0_28, %c0_29, %c0_30] : memref<1x128x128xf32, #tpu.memory_space<vmem>>, vector<1x128x128xf32>
    %60 = vector.shape_cast %59 : vector<1x128x128xf32> to vector<128x128xf32>
    %cst_31 = arith.constant dense<0.000000e+00> : vector<256x128xf32>
    %61 = tpu.matmul %55, %60, %cst_31 {dimension_numbers = #tpu.dot_dimension_numbers<[1], [0], [0], [1], [0, 0, 1, 1], [], []>} : vector<256x128xf32>, vector<128x128xf32>, vector<256x128xf32> -> vector<256x128xf32>
    %c6 = arith.constant 6 : index
    %c0_32 = arith.constant 0 : index
    %62 = vector.load %arg2[%c6, %c0_32] : memref<7x128xf32, #tpu.memory_space<vmem>>, vector<1x128xf32>
    %63 = vector.broadcast %62 : vector<1x128xf32> to vector<256x128xf32>
    %64 = arith.addf %61, %63 : vector<256x128xf32>
    %65 = tpu.iota {dimensions = array<i32: 1>} : vector<256x128xi32>
    %c8_i32 = arith.constant 8 : i32
    %66 = vector.broadcast %c8_i32 : i32 to vector<256x128xi32>
    %67 = arith.cmpi eq, %65, %66 : vector<256x128xi32>
    %68 = vector.shape_cast %58 : vector<256x1xf32> to vector<256x1xf32>
    %69 = vector.broadcast %68 : vector<256x1xf32> to vector<256x128xf32>
    %70 = arith.select %67, %69, %64 : vector<256x128xi1>, vector<256x128xf32>
    %c0_33 = arith.constant 0 : index
    %c0_34 = arith.constant 0 : index
    %71 = vector.load %arg6[%c0_33, %c0_34] : memref<256x128xf32, #tpu.memory_space<vmem>>, vector<256x128xf32>
    tpu.vector_store %arg6[%c0_33, %c0_34], %70 {strides = array<i32>} : memref<256x128xf32, #tpu.memory_space<vmem>>, vector<256x128xf32>,
    return
  }
  func.func @transform_0(%arg0: i32) -> (i32, i32) {
    %c0_i32 = arith.constant 0 : i32
    %c0_i32_0 = arith.constant 0 : i32
    return %arg0, %c0_i32 : i32, i32
  }
  func.func @transform_1(%arg0: i32) -> (i32, i32) {
    %c0_i32 = arith.constant 0 : i32
    %c0_i32_0 = arith.constant 0 : i32
    %c0_i32_1 = arith.constant 0 : i32
    return %c0_i32, %c0_i32_0 : i32, i32
  }
  func.func @transform_2(%arg0: i32) -> (i32, i32, i32) {
    %c0_i32 = arith.constant 0 : i32
    %c0_i32_0 = arith.constant 0 : i32
    %c0_i32_1 = arith.constant 0 : i32
    %c0_i32_2 = arith.constant 0 : i32
    return %c0_i32, %c0_i32_0, %c0_i32_1 : i32, i32, i32
  }
  func.func @transform_3(%arg0: i32) -> (i32, i32, i32) {
    %c0_i32 = arith.constant 0 : i32
    %c0_i32_0 = arith.constant 0 : i32
    %c0_i32_1 = arith.constant 0 : i32
    %c0_i32_2 = arith.constant 0 : i32
    return %c0_i32, %c0_i32_0, %c0_i32_1 : i32, i32, i32
  }
  func.func @transform_4(%arg0: i32) -> (i32, i32, i32) {
    %c0_i32 = arith.constant 0 : i32
    %c0_i32_0 = arith.constant 0 : i32
    %c0_i32_1 = arith.constant 0 : i32
    %c0_i32_2 = arith.constant 0 : i32
    return %c0_i32, %c0_i32_0, %c0_i32_1 : i32, i32, i32
  }
  func.func @transform_5(%arg0: i32) -> (i32, i32) {
    %c0_i32 = arith.constant 0 : i32
    %c0_i32_0 = arith.constant 0 : i32
    return %arg0, %c0_i32 : i32, i32
  }
}

</mosaic_0001>

<llo_original>
// kernel: tpu_custom_call.1
$region0: #{tpu_custom_call.1}
  #allocation0 [shape = 'u32[]', space=smem, size = 0x4, offset = 0x4, fixed_abs, tag = 'smem constant byte address 0x4 - core index']
  #allocation1 [shape = 'u32[144,128]{1,0:T(1,128)}', space=vmem, size = 0x12000, scoped, tag = 'internal scratch']
  %s0 = inlined_call_operand.hbm [shape: f32[512,128], index: 0, kind: input, shape index: {}]
  %s1 = inlined_call_operand.hbm [shape: f32[7,128], index: 1, kind: input, shape index: {}]
  %s2 = inlined_call_operand.hbm [shape: f32[2,128,128], index: 2, kind: input, shape index: {}]
  %s3 = inlined_call_operand.hbm [shape: f32[1,128,256], index: 3, kind: input, shape index: {}]
  %s4 = inlined_call_operand.hbm [shape: f32[1,128,128], index: 4, kind: input, shape index: {}]
  %s5 = inlined_call_operand.hbm [shape: f32[512,128], index: 5, kind: output, shape index: {}]
  %s6 = sld [smem:[#allocation0]]
  $region73: #{tpu_custom_call.1} parent=0
    _
  %s8 = ssub.s32 1, %s6
  %s9 = scalar_select 0, %s8, %s6
  $region1: #{tpu_custom_call.1} parent=0
    #allocation2 [shape = 'u8[262144]{0}', space=vmem, size = 0x40000, scoped, tag = 'input window, operand 0']
    #allocation3 [shape = 's32[2]{0}', space=sflag, size = 0x8, scoped, tag = 'scoped memory for tpu_custom_call.1']
    #allocation4 [shape = 's32[2]{0}', space=sflag, size = 0x8, scoped, tag = 'scoped memory for tpu_custom_call.1']
    #allocation5 [shape = 'u8[4096]{0}', space=vmem, size = 0x1000, scoped, tag = 'input window, operand 1, single buffered']
    #allocation6 [shape = 's32[1]{0}', space=sflag, size = 0x4, scoped, tag = 'scoped memory for tpu_custom_call.1']
    #allocation7 [shape = 'u8[131072]{0}', space=vmem, size = 0x20000, scoped, tag = 'input window, operand 2, single buffered']
    #allocation8 [shape = 'u8[131072]{0}', space=vmem, size = 0x20000, scoped, tag = 'input window, operand 3, single buffered']
    #allocation9 [shape = 's32[1]{0}', space=sflag, size = 0x4, scoped, tag = 'scoped memory for tpu_custom_call.1']
    #allocation10 [shape = 'u8[65536]{0}', space=vmem, size = 0x10000, scoped, tag = 'input window, operand 4, single buffered']
    #allocation11 [shape = 'u8[262144]{0}', space=vmem, size = 0x40000, scoped, tag = 'output window, operand 0']
    %10 = vsyncpa [#allocation3], 0
    %s11 = scalar_lea.sflag [#allocation3], 1
    %12 = vsyncpa %s11, 0
    %13 = vsyncpa [#allocation6], 0
    %14 = vsyncpa [#allocation9], 0
    %15 = vsyncpa [#allocation4], 0
    %s16 = scalar_lea.sflag [#allocation4], 1
    %17 = vsyncpa %s16, 0
    loop: start=0, step=1, limit=4
    $region2: #{tpu_custom_call.1} parent=1 // loop_pre_header
      _
    $region3: #{tpu_custom_call.1} parent=1 // loop_header
      %s19 = sphi 0, %s23
      %p20 = scmp.ge.s32.totalorder %s19, 4
      %s29 = sphi 0, %s31
      %s32 = sphi 0, %s29
      %s33 = sphi 0, %s32
      %s49 = sphi 0, %s33
      %s53 = sphi 0, %s53
      %s55 = sphi 0, %s53
      %s56 = sphi 0, %s55
      %s70 = sphi 0, %s56
      %s74 = sphi 0, %s74
      %s76 = sphi 0, %s74
      %s77 = sphi 0, %s76
      %s91 = sphi 0, %s77
      %s95 = sphi 0, %s95
      %s97 = sphi 0, %s95
      %s98 = sphi 0, %s97
      %s112 = sphi 0, %s98
      %s116 = sphi 0, %s116
      %s118 = sphi 0, %s116
      %s119 = sphi 0, %s118
      %s133 = sphi 0, %s119
      %s139 = sphi 0, %s141
      %s142 = sphi 0, %s139
      %s143 = sphi 0, %s142
      %s159 = sphi 0, %s143
    $region4: #{tpu_custom_call.1} parent=1 // loop_header_branch
      %22 = sbr.rel (%p20) target = $region8
    $region5: #{tpu_custom_call.1} parent=1 // loop_body
      %s24 = ssub.s32 %s19, 1
      %s25 = ssub.s32 %s19, 2
      %s26 = sadd.s32 %s19, 1
      %s27 = ssub.s32 %s19, %s26
      %p28 = scmp.eq.s32.totalorder %s27, 0
      %s30 = sadd.s32 %s29, 1
      %s31 = scalar_select %p28, %s29, %s30
      %p34 = pneg %p28
      %p35 = scmp.eq.s32.totalorder %s19, 1
      %p36 = por %p34, %p35
      %p37 = scmp.ne.s32.totalorder %s29, %s32
      %p38 = scmp.eq.s32.totalorder %s19, 0
      %p39 = por %p37, %p38
      %p40 = scmp.ne.s32.totalorder %s29, %s32
      %p41 = scmp.eq.s32.totalorder %s24, 1
      %p42 = por %p40, %p41
      %p43 = scmp.ne.s32.totalorder %s32, %s33
      %p44 = scmp.eq.s32.totalorder %s24, 0
      %p45 = por %p43, %p44
      %p46 = scmp.ne.s32.totalorder %s32, %s33
      %p47 = scmp.eq.s32.totalorder %s25, 1
      %p48 = por %p46, %p47
      %p50 = scmp.ne.s32.totalorder %s33, %s49
      %p51 = scmp.eq.s32.totalorder %s25, 0
      %p52 = por %p50, %p51
      %s54 = sadd.s32 %s53, 1
      %p57 = scmp.eq.s32.totalorder %s19, 1
      %p58 = scmp.ne.s32.totalorder %s53, %s55
      %p59 = scmp.eq.s32.totalorder %s19, 0
      %p60 = por %p58, %p59
      %p61 = scmp.ne.s32.totalorder %s53, %s55
      %p62 = scmp.eq.s32.totalorder %s24, 1
      %p63 = por %p61, %p62
      %p64 = scmp.ne.s32.totalorder %s55, %s56
      %p65 = scmp.eq.s32.totalorder %s24, 0
      %p66 = por %p64, %p65
      %p67 = scmp.ne.s32.totalorder %s55, %s56
      %p68 = scmp.eq.s32.totalorder %s25, 1
      %p69 = por %p67, %p68
      %p71 = scmp.ne.s32.totalorder %s56, %s70
      %p72 = scmp.eq.s32.totalorder %s25, 0
      %p73 = por %p71, %p72
      %s75 = sadd.s32 %s74, 1
      %p78 = scmp.eq.s32.totalorder %s19, 1
      %p79 = scmp.ne.s32.totalorder %s74, %s76
      %p80 = scmp.eq.s32.totalorder %s19, 0
      %p81 = por %p79, %p80
      %p82 = scmp.ne.s32.totalorder %s74, %s76
      %p83 = scmp.eq.s32.totalorder %s24, 1
      %p84 = por %p82, %p83
      %p85 = scmp.ne.s32.totalorder %s76, %s77
      %p86 = scmp.eq.s32.totalorder %s24, 0
      %p87 = por %p85, %p86
      %p88 = scmp.ne.s32.totalorder %s76, %s77
      %p89 = scmp.eq.s32.totalorder %s25, 1
      %p90 = por %p88, %p89
      %p92 = scmp.ne.s32.totalorder %s77, %s91
      %p93 = scmp.eq.s32.totalorder %s25, 0
      %p94 = por %p92, %p93
      %s96 = sadd.s32 %s95, 1
      %p99 = scmp.eq.s32.totalorder %s19, 1
      %p100 = scmp.ne.s32.totalorder %s95, %s97
      %p101 = scmp.eq.s32.totalorder %s19, 0
      %p102 = por %p100, %p101
      %p103 = scmp.ne.s32.totalorder %s95, %s97
      %p104 = scmp.eq.s32.totalorder %s24, 1
      %p105 = por %p103, %p104
      %p106 = scmp.ne.s32.totalorder %s97, %s98
      %p107 = scmp.eq.s32.totalorder %s24, 0
      %p108 = por %p106, %p107
      %p109 = scmp.ne.s32.totalorder %s97, %s98
      %p110 = scmp.eq.s32.totalorder %s25, 1
      %p111 = por %p109, %p110
      %p113 = scmp.ne.s32.totalorder %s98, %s112
      %p114 = scmp.eq.s32.totalorder %s25, 0
      %p115 = por %p113, %p114
      %s117 = sadd.s32 %s116, 1
      %p120 = scmp.eq.s32.totalorder %s19, 1
      %p121 = scmp.ne.s32.totalorder %s116, %s118
      %p122 = scmp.eq.s32.totalorder %s19, 0
      %p123 = por %p121, %p122
      %p124 = scmp.ne.s32.totalorder %s116, %s118
      %p125 = scmp.eq.s32.totalorder %s24, 1
      %p126 = por %p124, %p125
      %p127 = scmp.ne.s32.totalorder %s118, %s119
      %p128 = scmp.eq.s32.totalorder %s24, 0
      %p129 = por %p127, %p128
      %p130 = scmp.ne.s32.totalorder %s118, %s119
      %p131 = scmp.eq.s32.totalorder %s25, 1
      %p132 = por %p130, %p131
      %p134 = scmp.ne.s32.totalorder %s119, %s133
      %p135 = scmp.eq.s32.totalorder %s25, 0
      %p136 = por %p134, %p135
      %s137 = ssub.s32 %s19, %s26
      %p138 = scmp.eq.s32.totalorder %s137, 0
      %s140 = sadd.s32 %s139, 1
      %s141 = scalar_select %p138, %s139, %s140
      %p144 = pneg %p138
      %p145 = scmp.eq.s32.totalorder %s19, 1
      %p146 = por %p144, %p145
      %p147 = scmp.ne.s32.totalorder %s139, %s142
      %p148 = scmp.eq.s32.totalorder %s19, 0
      %p149 = por %p147, %p148
      %p150 = scmp.ne.s32.totalorder %s139, %s142
      %p151 = scmp.eq.s32.totalorder %s24, 1
      %p152 = por %p150, %p151
      %p153 = scmp.ne.s32.totalorder %s142, %s143
      %p154 = scmp.eq.s32.totalorder %s24, 0
      %p155 = por %p153, %p154
      %p156 = scmp.ne.s32.totalorder %s142, %s143
      %p157 = scmp.eq.s32.totalorder %s25, 1
      %p158 = por %p156, %p157
      %p160 = scmp.ne.s32.totalorder %s143, %s159
      %p161 = scmp.eq.s32.totalorder %s25, 0
      %p162 = por %p160, %p161
      %p163 = scmp.le.s32.totalorder 1, %s19
      %p164 = scmp.lt.s32.totalorder %s19, 3
      %p165 = pnand %p163, %p164
      %p166 = pneg %p165
      // Predicated region
      $region9: #{tpu_custom_call.1} parent=5 // pred_check
        _
      $region10: #{tpu_custom_call.1} parent=5 // pred_check_branch
        %168 = sbr.rel (%p165) target = $region12
      $region11: #{tpu_custom_call.1} parent=5 // pred_region
        %s169 = ssub.s32 %s19, 1
        // Predicated region
        $region13: #{tpu_custom_call.1} parent=11 // pred_check
          %p170 = pneg %p66
        $region14: #{tpu_custom_call.1} parent=11 // pred_check_branch
          %172 = sbr.rel (%p170) target = $region16
        $region15: #{tpu_custom_call.1} parent=11 // pred_region
          %s174 = ssub.s32 128, 128
          %175 = vsyncadd [#allocation6], %s174
          %s177 = sshll.u32 [#allocation5], 4
          %s178 = int_to_ptr.vmem [resolvable:$true] %s177
          %180 = dma.hbm_to_vmem [thread:$0]  %s1, 128, %s178, [#allocation6]
        $region16: #{tpu_custom_call.1} parent=11 // pred_fallthru
          _
        // Predicated region
        $region17: #{tpu_custom_call.1} parent=11 // pred_check
          %p181 = pneg %p87
        $region18: #{tpu_custom_call.1} parent=11 // pred_check_branch
          %183 = sbr.rel (%p181) target = $region20
        $region19: #{tpu_custom_call.1} parent=11 // pred_region
          %s185 = ssub.s32 4096, 4096
          %186 = vsyncadd [#allocation6], %s185
          %s187 = sshll.u32 [#allocation7], 4
          %s188 = int_to_ptr.vmem [resolvable:$true] %s187
          %193 = dma.hbm_to_vmem [thread:$0]  %s2, 4096, %s188, [#allocation6], 128, 128, 8
        $region20: #{tpu_custom_call.1} parent=11 // pred_fallthru
          _
        // Predicated region
        $region21: #{tpu_custom_call.1} parent=11 // pred_check
          %p194 = pneg %p108
        $region22: #{tpu_custom_call.1} parent=11 // pred_check_branch
          %196 = sbr.rel (%p194) target = $region24
        $region23: #{tpu_custom_call.1} parent=11 // pred_region
          %s198 = ssub.s32 4096, 4096
          %199 = vsyncadd [#allocation9], %s198
          %s200 = sshll.u32 [#allocation8], 4
          %s201 = int_to_ptr.vmem [resolvable:$true] %s200
          %206 = dma.hbm_to_vmem [thread:$0]  %s3, 4096, %s201, [#allocation9], 256, 256, 16
        $region24: #{tpu_custom_call.1} parent=11 // pred_fallthru
          _
        // Predicated region
        $region25: #{tpu_custom_call.1} parent=11 // pred_check
          %p207 = pneg %p129
        $region26: #{tpu_custom_call.1} parent=11 // pred_check_branch
          %209 = sbr.rel (%p207) target = $region28
        $region27: #{tpu_custom_call.1} parent=11 // pred_region
          %s211 = ssub.s32 2048, 2048
          %212 = vsyncadd [#allocation9], %s211
          %s213 = sshll.u32 [#allocation10], 4
          %s214 = int_to_ptr.vmem [resolvable:$true] %s213
          %219 = dma.hbm_to_vmem [thread:$0]  %s4, 2048, %s214, [#allocation9], 128, 128, 8
        $region28: #{tpu_custom_call.1} parent=11 // pred_fallthru
          _
      $region12: #{tpu_custom_call.1} parent=5 // pred_fallthru
        _
      %p220 = scmp.lt.s32.totalorder %s19, 2
      // Predicated region
      $region29: #{tpu_custom_call.1} parent=5 // pred_check
        %p221 = pneg %p220
      $region30: #{tpu_custom_call.1} parent=5 // pred_check_branch
        %223 = sbr.rel (%p221) target = $region32
      $region31: #{tpu_custom_call.1} parent=5 // pred_region
        // Predicated region
        $region33: #{tpu_custom_call.1} parent=31 // pred_check
          %p224 = pneg %p39
        $region34: #{tpu_custom_call.1} parent=31 // pred_check_branch
          %226 = sbr.rel (%p224) target = $region36
        $region35: #{tpu_custom_call.1} parent=31 // pred_region
          %s227 = sand.u32 %s29, 1
          %s228 = scalar_lea.sflag [#allocation3], %s227
          %s229 = sand.u32 %s29, 1
          %s230 = smul.addr %s229, 256
          %s231 = scalar_lea.vmem [#allocation2], %s230
          %s232 = smul.u32 32, %s19
          %s234 = ssub.s32 4096, 4096
          %235 = vsyncadd %s228, %s234
          %s236 = smul.addr %s232, 128
          %s237 = scalar_lea.hbm %s0, %s236
          %s238 = sshll.u32 %s231, 4
          %s239 = int_to_ptr.vmem [resolvable:$true] %s238
          %244 = dma.hbm_to_vmem [thread:$0]  %s237, 4096, %s239, %s228, 128, 128, 8
        $region36: #{tpu_custom_call.1} parent=31 // pred_fallthru
          _
      $region32: #{tpu_custom_call.1} parent=5 // pred_fallthru
        _
      %p245 = scmp.le.s32.totalorder 1, %s19
      %p246 = scmp.lt.s32.totalorder %s19, 3
      %p247 = pnand %p245, %p246
      %p248 = pneg %p247
      // Predicated region
      $region37: #{tpu_custom_call.1} parent=5 // pred_check
        _
      $region38: #{tpu_custom_call.1} parent=5 // pred_check_branch
        %250 = sbr.rel (%p247) target = $region40
      $region39: #{tpu_custom_call.1} parent=5 // pred_region
        %s251 = ssub.s32 %s19, 1
        %s252 = sand.u32 %s32, 1
        %s253 = scalar_lea.sflag [#allocation3], %s252
        %s254 = sand.u32 %s32, 1
        %s255 = smul.addr %s254, 256
        %s256 = scalar_lea.vmem [#allocation2], %s255
        // Predicated region
        $region41: #{tpu_custom_call.1} parent=39 // pred_check
          %p257 = pneg %p45
        $region42: #{tpu_custom_call.1} parent=39 // pred_check_branch
          %259 = sbr.rel (%p257) target = $region44
        $region43: #{tpu_custom_call.1} parent=39 // pred_region
          %260 = dma.done %s253, 4096
        $region44: #{tpu_custom_call.1} parent=39 // pred_fallthru
          _
        // Predicated region
        $region45: #{tpu_custom_call.1} parent=39 // pred_check
          %p261 = pneg %p66
        $region46: #{tpu_custom_call.1} parent=39 // pred_check_branch
          %263 = sbr.rel (%p261) target = $region48
        $region47: #{tpu_custom_call.1} parent=39 // pred_region
          %264 = dma.done [#allocation6], 128
        $region48: #{tpu_custom_call.1} parent=39 // pred_fallthru
          _
        // Predicated region
        $region49: #{tpu_custom_call.1} parent=39 // pred_check
          %p265 = pneg %p87
        $region50: #{tpu_custom_call.1} parent=39 // pred_check_branch
          %267 = sbr.rel (%p265) target = $region52
        $region51: #{tpu_custom_call.1} parent=39 // pred_region
          %268 = dma.done [#allocation6], 4096
        $region52: #{tpu_custom_call.1} parent=39 // pred_fallthru
          _
        // Predicated region
        $region53: #{tpu_custom_call.1} parent=39 // pred_check
          %p269 = pneg %p108
        $region54: #{tpu_custom_call.1} parent=39 // pred_check_branch
          %271 = sbr.rel (%p269) target = $region56
        $region55: #{tpu_custom_call.1} parent=39 // pred_region
          %272 = dma.done [#allocation9], 4096
        $region56: #{tpu_custom_call.1} parent=39 // pred_fallthru
          _
        // Predicated region
        $region57: #{tpu_custom_call.1} parent=39 // pred_check
          %p273 = pneg %p129
        $region58: #{tpu_custom_call.1} parent=39 // pred_check_branch
          %275 = sbr.rel (%p273) target = $region60
        $region59: #{tpu_custom_call.1} parent=39 // pred_region
          %276 = dma.done [#allocation9], 2048
        $region60: #{tpu_custom_call.1} parent=39 // pred_fallthru
          _
        %s277 = sand.u32 %s32, 1
        %s278 = scalar_lea.sflag [#allocation3], %s277
        %s279 = sand.u32 %s32, 1
        %s280 = smul.addr %s279, 256
        %s281 = scalar_lea.vmem [#allocation2], %s280
        %p282 = pneg %p45
        %p283 = pneg %p42
        %p284 = pneg %p66
        %p285 = pneg %p63
        %p286 = pneg %p87
        %p287 = pneg %p84
        %p288 = pneg %p108
        %p289 = pneg %p105
        %p290 = pneg %p129
        %p291 = pneg %p126
        %p292 = pneg %p155
        %p293 = pneg %p152
        %s294 = sand.u32 %s142, 1
        %s295 = scalar_lea.sflag [#allocation4], %s294
        %s296 = sand.u32 %s142, 1
        %s297 = smul.addr %s296, 256
        %s298 = scalar_lea.vmem [#allocation11], %s297
        %s299 = smul.u32 32, %s24
        %s300 = smul.u32 32, %s24
        %v301 = vld [vmem:[%s256] sm:$0xff]
        %v302 = vld [vmem:[%s256 + $0x8] sm:$0xff]
        %v303 = vld [vmem:[%s256 + $0x10] sm:$0xff]
        %v304 = vld [vmem:[%s256 + $0x18] sm:$0xff]
        %v305 = vld [vmem:[%s256 + $0x20] sm:$0xff]
        %v306 = vld [vmem:[%s256 + $0x28] sm:$0xff]
        %v307 = vld [vmem:[%s256 + $0x30] sm:$0xff]
        %v308 = vld [vmem:[%s256 + $0x38] sm:$0xff]
        %v309 = vld [vmem:[%s256 + $0x40] sm:$0xff]
        %v310 = vld [vmem:[%s256 + $0x48] sm:$0xff]
        %v311 = vld [vmem:[%s256 + $0x50] sm:$0xff]
        %v312 = vld [vmem:[%s256 + $0x58] sm:$0xff]
        %v313 = vld [vmem:[%s256 + $0x60] sm:$0xff]
        %v314 = vld [vmem:[%s256 + $0x68] sm:$0xff]
        %v315 = vld [vmem:[%s256 + $0x70] sm:$0xff]
        %v316 = vld [vmem:[%s256 + $0x78] sm:$0xff]
        %v317 = vld [vmem:[%s256 + $0x80] sm:$0xff]
        %v318 = vld [vmem:[%s256 + $0x88] sm:$0xff]
        %v319 = vld [vmem:[%s256 + $0x90] sm:$0xff]
        %v320 = vld [vmem:[%s256 + $0x98] sm:$0xff]
        %v321 = vld [vmem:[%s256 + $0xa0] sm:$0xff]
        %v322 = vld [vmem:[%s256 + $0xa8] sm:$0xff]
        %v323 = vld [vmem:[%s256 + $0xb0] sm:$0xff]
        %v324 = vld [vmem:[%s256 + $0xb8] sm:$0xff]
        %v325 = vld [vmem:[%s256 + $0xc0] sm:$0xff]
        %v326 = vld [vmem:[%s256 + $0xc8] sm:$0xff]
        %v327 = vld [vmem:[%s256 + $0xd0] sm:$0xff]
        %v328 = vld [vmem:[%s256 + $0xd8] sm:$0xff]
        %v329 = vld [vmem:[%s256 + $0xe0] sm:$0xff]
        %v330 = vld [vmem:[%s256 + $0xe8] sm:$0xff]
        %v331 = vld [vmem:[%s256 + $0xf0] sm:$0xff]
        %v332 = vld [vmem:[%s256 + $0xf8] sm:$0xff]
        %v333 = vld [vmem:[#allocation5] sm:$0x1]
        %v334 = vlaneseq
        %v335 = vshrl.u32 %v334, 7
        %v336 = vsub.s32 0, %v335
        %v337 = vrot.slane %v333, %v336
        %v338 = vadd.f32 %v301, %v337
        %v339 = vadd.f32 %v302, %v337
        %v340 = vadd.f32 %v303, %v337
        %v341 = vadd.f32 %v304, %v337
        %v342 = vadd.f32 %v305, %v337
        %v343 = vadd.f32 %v306, %v337
        %v344 = vadd.f32 %v307, %v337
        %v345 = vadd.f32 %v308, %v337
        %v346 = vadd.f32 %v309, %v337
        %v347 = vadd.f32 %v310, %v337
        %v348 = vadd.f32 %v311, %v337
        %v349 = vadd.f32 %v312, %v337
        %v350 = vadd.f32 %v313, %v337
        %v351 = vadd.f32 %v314, %v337
        %v352 = vadd.f32 %v315, %v337
        %v353 = vadd.f32 %v316, %v337
        %v354 = vadd.f32 %v317, %v337
        %v355 = vadd.f32 %v318, %v337
        %v356 = vadd.f32 %v319, %v337
        %v357 = vadd.f32 %v320, %v337
        %v358 = vadd.f32 %v321, %v337
        %v359 = vadd.f32 %v322, %v337
        %v360 = vadd.f32 %v323, %v337
        %v361 = vadd.f32 %v324, %v337
        %v362 = vadd.f32 %v325, %v337
        %v363 = vadd.f32 %v326, %v337
        %v364 = vadd.f32 %v327, %v337
        %v365 = vadd.f32 %v328, %v337
        %v366 = vadd.f32 %v329, %v337
        %v367 = vadd.f32 %v330, %v337
        %v368 = vadd.f32 %v331, %v337
        %v369 = vadd.f32 %v332, %v337
        %v370 = vld [vmem:[#allocation5 + $0x1] sm:$0x1]
        %v371 = vlaneseq
        %v372 = vshrl.u32 %v371, 7
        %v373 = vsub.s32 0, %v372
        %v374 = vrot.slane %v370, %v373
        %v375 = vmul.f32 %v338, %v374
        %v376 = vmul.f32 %v339, %v374
        %v377 = vmul.f32 %v340, %v374
        %v378 = vmul.f32 %v341, %v374
        %v379 = vmul.f32 %v342, %v374
        %v380 = vmul.f32 %v343, %v374
        %v381 = vmul.f32 %v344, %v374
        %v382 = vmul.f32 %v345, %v374
        %v383 = vmul.f32 %v346, %v374
        %v384 = vmul.f32 %v347, %v374
        %v385 = vmul.f32 %v348, %v374
        %v386 = vmul.f32 %v349, %v374
        %v387 = vmul.f32 %v350, %v374
        %v388 = vmul.f32 %v351, %v374
        %v389 = vmul.f32 %v352, %v374
        %v390 = vmul.f32 %v353, %v374
        %v391 = vmul.f32 %v354, %v374
        %v392 = vmul.f32 %v355, %v374
        %v393 = vmul.f32 %v356, %v374
        %v394 = vmul.f32 %v357, %v374
        %v395 = vmul.f32 %v358, %v374
        %v396 = vmul.f32 %v359, %v374
        %v397 = vmul.f32 %v360, %v374
        %v398 = vmul.f32 %v361, %v374
        %v399 = vmul.f32 %v362, %v374
        %v400 = vmul.f32 %v363, %v374
        %v401 = vmul.f32 %v364, %v374
        %v402 = vmul.f32 %v365, %v374
        %v403 = vmul.f32 %v366, %v374
        %v404 = vmul.f32 %v367, %v374
        %v405 = vmul.f32 %v368, %v374
        %v406 = vmul.f32 %v369, %v374
        %v407 = vld [vmem:[#allocation7] sm:$0xff]
        %v408 = vld [vmem:[#allocation7 + $0x8] sm:$0xff]
        %v409 = vld [vmem:[#allocation7 + $0x10] sm:$0xff]
        %v410 = vld [vmem:[#allocation7 + $0x18] sm:$0xff]
        %v411 = vld [vmem:[#allocation7 + $0x20] sm:$0xff]
        %v412 = vld [vmem:[#allocation7 + $0x28] sm:$0xff]
        %v413 = vld [vmem:[#allocation7 + $0x30] sm:$0xff]
        %v414 = vld [vmem:[#allocation7 + $0x38] sm:$0xff]
        %v415 = vld [vmem:[#allocation7 + $0x40] sm:$0xff]
        %v416 = vld [vmem:[#allocation7 + $0x48] sm:$0xff]
        %v417 = vld [vmem:[#allocation7 + $0x50] sm:$0xff]
        %v418 = vld [vmem:[#allocation7 + $0x58] sm:$0xff]
        %v419 = vld [vmem:[#allocation7 + $0x60] sm:$0xff]
        %v420 = vld [vmem:[#allocation7 + $0x68] sm:$0xff]
        %v421 = vld [vmem:[#allocation7 + $0x70] sm:$0xff]
        %v422 = vld [vmem:[#allocation7 + $0x78] sm:$0xff]
        %v423 = vld [vmem:[#allocation5 + $0x2] sm:$0x1]
        %v424 = vlaneseq
        %v425 = vshrl.u32 %v424, 7
        %v426 = vsub.s32 0, %v425
        %v427 = vrot.slane %v423, %v426
        %428 = vmatprep.subr.mxu0 0.0
        %429 = vmatpush1.msra.mxu0 %v422
        %430 = vmatprep.subr.mxu0 0.0
        %431 = vmatpush1.msra.mxu0 %v421
        %432 = vmatprep.subr.mxu0 0.0
        %433 = vmatpush1.msra.mxu0 %v420
        %434 = vmatprep.subr.mxu0 0.0
        %435 = vmatpush1.msra.mxu0 %v419
        %436 = vmatprep.subr.mxu0 0.0
        %437 = vmatpush1.msra.mxu0 %v418
        %438 = vmatprep.subr.mxu0 0.0
        %439 = vmatpush1.msra.mxu0 %v417
        %440 = vmatprep.subr.mxu0 0.0
        %441 = vmatpush1.msra.mxu0 %v416
        %442 = vmatprep.subr.mxu0 0.0
        %443 = vmatpush1.msra.mxu0 %v415
        %444 = vmatprep.subr.mxu0 0.0
        %445 = vmatpush1.msra.mxu0 %v414
        %446 = vmatprep.subr.mxu0 0.0
        %447 = vmatpush1.msra.mxu0 %v413
        %448 = vmatprep.subr.mxu0 0.0
        %449 = vmatpush1.msra.mxu0 %v412
        %450 = vmatprep.subr.mxu0 0.0
        %451 = vmatpush1.msra.mxu0 %v411
        %452 = vmatprep.subr.mxu0 0.0
        %453 = vmatpush1.msra.mxu0 %v410
        %454 = vmatprep.subr.mxu0 0.0
        %455 = vmatpush1.msra.mxu0 %v409
        %456 = vmatprep.subr.mxu0 0.0
        %457 = vmatpush1.msra.mxu0 %v408
        %458 = vmatprep.subr.mxu0 0.0
        %459 = vmatpush1.msra.mxu0 %v407
        %460 = vmatprep.subr.mxu0 0.0
        %461 = vmatpush2.msra.mxu0 0.0
        %462 = vmatprep.subr.mxu0 0.0
        %463 = vmatpush2.msra.mxu0 0.0
        %464 = vmatprep.subr.mxu0 0.0
        %465 = vmatpush2.msra.mxu0 0.0
        %466 = vmatprep.subr.mxu0 0.0
        %467 = vmatpush2.msra.mxu0 0.0
        %468 = vmatprep.subr.mxu0 0.0
        %469 = vmatpush2.msra.mxu0 0.0
        %470 = vmatprep.subr.mxu0 0.0
        %471 = vmatpush2.msra.mxu0 0.0
        %472 = vmatprep.subr.mxu0 0.0
        %473 = vmatpush2.msra.mxu0 0.0
        %474 = vmatprep.subr.mxu0 0.0
        %475 = vmatpush2.msra.mxu0 0.0
        %476 = vmatprep.subr.mxu0 0.0
        %477 = vmatpush2.msra.mxu0 0.0
        %478 = vmatprep.subr.mxu0 0.0
        %479 = vmatpush2.msra.mxu0 0.0
        %480 = vmatprep.subr.mxu0 0.0
        %481 = vmatpush2.msra.mxu0 0.0
        %482 = vmatprep.subr.mxu0 0.0
        %483 = vmatpush2.msra.mxu0 0.0
        %484 = vmatprep.subr.mxu0 0.0
        %485 = vmatpush2.msra.mxu0 0.0
        %486 = vmatprep.subr.mxu0 0.0
        %487 = vmatpush2.msra.mxu0 0.0
        %488 = vmatprep.subr.mxu0 0.0
        %489 = vmatpush2.msra.mxu0 0.0
        %490 = vmatprep.subr.mxu0 0.0
        %491 = vmatpush2.msra.mxu0 0.0
        %492 = vmatprep.mubr.f32.mxu0 0.0
        %493 = vmatmul.mubr.f32.gmra.mxu0 %v375
        %v494 = vpop.f32.mrf.mxu0
        %v495 = vadd.f32 %v427, %v494
        %v496 = vpop.f32.mrf.mxu0
        %497 = vmatprep.mubr.f32.mxu0 0.0
        %498 = vmatmul.mubr.f32.gmra.mxu0 %v376
        %v499 = vpop.f32.mrf.mxu0
        %v500 = vadd.f32 %v427, %v499
        %v501 = vpop.f32.mrf.mxu0
        %502 = vmatprep.mubr.f32.mxu0 0.0
        %503 = vmatmul.mubr.f32.gmra.mxu0 %v377
        %v504 = vpop.f32.mrf.mxu0
        %v505 = vadd.f32 %v427, %v504
        %v506 = vpop.f32.mrf.mxu0
        %507 = vmatprep.mubr.f32.mxu0 0.0
        %508 = vmatmul.mubr.f32.gmra.mxu0 %v378
        %v509 = vpop.f32.mrf.mxu0
        %v510 = vadd.f32 %v427, %v509
        %v511 = vpop.f32.mrf.mxu0
        %512 = vmatprep.mubr.f32.mxu0 0.0
        %513 = vmatmul.mubr.f32.gmra.mxu0 %v379
        %v514 = vpop.f32.mrf.mxu0
        %v515 = vadd.f32 %v427, %v514
        %v516 = vpop.f32.mrf.mxu0
        %517 = vmatprep.mubr.f32.mxu0 0.0
        %518 = vmatmul.mubr.f32.gmra.mxu0 %v380
        %v519 = vpop.f32.mrf.mxu0
        %v520 = vadd.f32 %v427, %v519
        %v521 = vpop.f32.mrf.mxu0
        %522 = vmatprep.mubr.f32.mxu0 0.0
        %523 = vmatmul.mubr.f32.gmra.mxu0 %v381
        %v524 = vpop.f32.mrf.mxu0
        %v525 = vadd.f32 %v427, %v524
        %v526 = vpop.f32.mrf.mxu0
        %527 = vmatprep.mubr.f32.mxu0 0.0
        %528 = vmatmul.mubr.f32.gmra.mxu0 %v382
        %v529 = vpop.f32.mrf.mxu0
        %v530 = vadd.f32 %v427, %v529
        %v531 = vpop.f32.mrf.mxu0
        %532 = vmatprep.mubr.f32.mxu0 0.0
        %533 = vmatmul.mubr.f32.gmra.mxu0 %v383
        %v534 = vpop.f32.mrf.mxu0
        %v535 = vadd.f32 %v427, %v534
        %v536 = vpop.f32.mrf.mxu0
        %537 = vmatprep.mubr.f32.mxu0 0.0
        %538 = vmatmul.mubr.f32.gmra.mxu0 %v384
        %v539 = vpop.f32.mrf.mxu0
        %v540 = vadd.f32 %v427, %v539
        %v541 = vpop.f32.mrf.mxu0
        %542 = vmatprep.mubr.f32.mxu0 0.0
        %543 = vmatmul.mubr.f32.gmra.mxu0 %v385
        %v544 = vpop.f32.mrf.mxu0
        %v545 = vadd.f32 %v427, %v544
        %v546 = vpop.f32.mrf.mxu0
        %547 = vmatprep.mubr.f32.mxu0 0.0
        %548 = vmatmul.mubr.f32.gmra.mxu0 %v386
        %v549 = vpop.f32.mrf.mxu0
        %v550 = vadd.f32 %v427, %v549
        %v551 = vpop.f32.mrf.mxu0
        %552 = vmatprep.mubr.f32.mxu0 0.0
        %553 = vmatmul.mubr.f32.gmra.mxu0 %v387
        %v554 = vpop.f32.mrf.mxu0
        %v555 = vadd.f32 %v427, %v554
        %v556 = vpop.f32.mrf.mxu0
        %557 = vmatprep.mubr.f32.mxu0 0.0
        %558 = vmatmul.mubr.f32.gmra.mxu0 %v388
        %v559 = vpop.f32.mrf.mxu0
        %v560 = vadd.f32 %v427, %v559
        %v561 = vpop.f32.mrf.mxu0
        %562 = vmatprep.mubr.f32.mxu0 0.0
        %563 = vmatmul.mubr.f32.gmra.mxu0 %v389
        %v564 = vpop.f32.mrf.mxu0
        %v565 = vadd.f32 %v427, %v564
        %v566 = vpop.f32.mrf.mxu0
        %567 = vmatprep.mubr.f32.mxu0 0.0
        %568 = vmatmul.mubr.f32.gmra.mxu0 %v390
        %v569 = vpop.f32.mrf.mxu0
        %v570 = vadd.f32 %v427, %v569
        %v571 = vpop.f32.mrf.mxu0
        %572 = vmatprep.mubr.f32.mxu0 0.0
        %573 = vmatmul.mubr.f32.gmra.mxu0 %v391
        %v574 = vpop.f32.mrf.mxu0
        %v575 = vadd.f32 %v427, %v574
        %v576 = vpop.f32.mrf.mxu0
        %577 = vmatprep.mubr.f32.mxu0 0.0
        %578 = vmatmul.mubr.f32.gmra.mxu0 %v392
        %v579 = vpop.f32.mrf.mxu0
        %v580 = vadd.f32 %v427, %v579
        %v581 = vpop.f32.mrf.mxu0
        %582 = vmatprep.mubr.f32.mxu0 0.0
        %583 = vmatmul.mubr.f32.gmra.mxu0 %v393
        %v584 = vpop.f32.mrf.mxu0
        %v585 = vadd.f32 %v427, %v584
        %v586 = vpop.f32.mrf.mxu0
        %587 = vmatprep.mubr.f32.mxu0 0.0
        %588 = vmatmul.mubr.f32.gmra.mxu0 %v394
        %v589 = vpop.f32.mrf.mxu0
        %v590 = vadd.f32 %v427, %v589
        %v591 = vpop.f32.mrf.mxu0
        %592 = vmatprep.mubr.f32.mxu0 0.0
        %593 = vmatmul.mubr.f32.gmra.mxu0 %v395
        %v594 = vpop.f32.mrf.mxu0
        %v595 = vadd.f32 %v427, %v594
        %v596 = vpop.f32.mrf.mxu0
        %597 = vmatprep.mubr.f32.mxu0 0.0
        %598 = vmatmul.mubr.f32.gmra.mxu0 %v396
        %v599 = vpop.f32.mrf.mxu0
        %v600 = vadd.f32 %v427, %v599
        %v601 = vpop.f32.mrf.mxu0
        %602 = vmatprep.mubr.f32.mxu0 0.0
        %603 = vmatmul.mubr.f32.gmra.mxu0 %v397
        %v604 = vpop.f32.mrf.mxu0
        %v605 = vadd.f32 %v427, %v604
        %v606 = vpop.f32.mrf.mxu0
        %607 = vmatprep.mubr.f32.mxu0 0.0
        %608 = vmatmul.mubr.f32.gmra.mxu0 %v398
        %v609 = vpop.f32.mrf.mxu0
        %v610 = vadd.f32 %v427, %v609
        %v611 = vpop.f32.mrf.mxu0
        %612 = vmatprep.mubr.f32.mxu0 0.0
        %613 = vmatmul.mubr.f32.gmra.mxu0 %v399
        %v614 = vpop.f32.mrf.mxu0
        %v615 = vadd.f32 %v427, %v614
        %v616 = vpop.f32.mrf.mxu0
        %617 = vmatprep.mubr.f32.mxu0 0.0
        %618 = vmatmul.mubr.f32.gmra.mxu0 %v400
        %v619 = vpop.f32.mrf.mxu0
        %v620 = vadd.f32 %v427, %v619
        %v621 = vpop.f32.mrf.mxu0
        %622 = vmatprep.mubr.f32.mxu0 0.0
        %623 = vmatmul.mubr.f32.gmra.mxu0 %v401
        %v624 = vpop.f32.mrf.mxu0
        %v625 = vadd.f32 %v427, %v624
        %v626 = vpop.f32.mrf.mxu0
        %627 = vmatprep.mubr.f32.mxu0 0.0
        %628 = vmatmul.mubr.f32.gmra.mxu0 %v402
        %v629 = vpop.f32.mrf.mxu0
        %v630 = vadd.f32 %v427, %v629
        %v631 = vpop.f32.mrf.mxu0
        %632 = vmatprep.mubr.f32.mxu0 0.0
        %633 = vmatmul.mubr.f32.gmra.mxu0 %v403
        %v634 = vpop.f32.mrf.mxu0
        %v635 = vadd.f32 %v427, %v634
        %v636 = vpop.f32.mrf.mxu0
        %637 = vmatprep.mubr.f32.mxu0 0.0
        %638 = vmatmul.mubr.f32.gmra.mxu0 %v404
        %v639 = vpop.f32.mrf.mxu0
        %v640 = vadd.f32 %v427, %v639
        %v641 = vpop.f32.mrf.mxu0
        %642 = vmatprep.mubr.f32.mxu0 0.0
        %643 = vmatmul.mubr.f32.gmra.mxu0 %v405
        %v644 = vpop.f32.mrf.mxu0
        %v645 = vadd.f32 %v427, %v644
        %v646 = vpop.f32.mrf.mxu0
        %647 = vmatprep.mubr.f32.mxu0 0.0
        %648 = vmatmul.mubr.f32.gmra.mxu0 %v406
        %v649 = vpop.f32.mrf.mxu0
        %v650 = vadd.f32 %v427, %v649
        %v651 = vpop.f32.mrf.mxu0
        %652 = vdwg.mxu0
        %v653 = vtanh.pop %v495
        %v654 = vtanh.pop %v500
        %v655 = vtanh.pop %v505
        %v656 = vtanh.pop %v510
        %v657 = vtanh.pop %v515
        %v658 = vtanh.pop %v520
        %v659 = vtanh.pop %v525
        %v660 = vtanh.pop %v530
        %v661 = vtanh.pop %v535
        %v662 = vtanh.pop %v540
        %v663 = vtanh.pop %v545
        %v664 = vtanh.pop %v550
        %v665 = vtanh.pop %v555
        %v666 = vtanh.pop %v560
        %v667 = vtanh.pop %v565
        %v668 = vtanh.pop %v570
        %v669 = vtanh.pop %v575
        %v670 = vtanh.pop %v580
        %v671 = vtanh.pop %v585
        %v672 = vtanh.pop %v590
        %v673 = vtanh.pop %v595
        %v674 = vtanh.pop %v600
        %v675 = vtanh.pop %v605
        %v676 = vtanh.pop %v610
        %v677 = vtanh.pop %v615
        %v678 = vtanh.pop %v620
        %v679 = vtanh.pop %v625
        %v680 = vtanh.pop %v630
        %v681 = vtanh.pop %v635
        %v682 = vtanh.pop %v640
        %v683 = vtanh.pop %v645
        %v684 = vtanh.pop %v650
        %s685 = scalar_lea.vmem [#allocation7], 128
        %v686 = vld [vmem:[%s685] sm:$0xff]
        %v687 = vld [vmem:[%s685 + $0x8] sm:$0xff]
        %v688 = vld [vmem:[%s685 + $0x10] sm:$0xff]
        %v689 = vld [vmem:[%s685 + $0x18] sm:$0xff]
        %v690 = vld [vmem:[%s685 + $0x20] sm:$0xff]
        %v691 = vld [vmem:[%s685 + $0x28] sm:$0xff]
        %v692 = vld [vmem:[%s685 + $0x30] sm:$0xff]
        %v693 = vld [vmem:[%s685 + $0x38] sm:$0xff]
        %v694 = vld [vmem:[%s685 + $0x40] sm:$0xff]
        %v695 = vld [vmem:[%s685 + $0x48] sm:$0xff]
        %v696 = vld [vmem:[%s685 + $0x50] sm:$0xff]
        %v697 = vld [vmem:[%s685 + $0x58] sm:$0xff]
        %v698 = vld [vmem:[%s685 + $0x60] sm:$0xff]
        %v699 = vld [vmem:[%s685 + $0x68] sm:$0xff]
        %v700 = vld [vmem:[%s685 + $0x70] sm:$0xff]
        %v701 = vld [vmem:[%s685 + $0x78] sm:$0xff]
        %v702 = vld [vmem:[#allocation5 + $0x3] sm:$0x1]
        %v703 = vlaneseq
        %v704 = vshrl.u32 %v703, 7
        %v705 = vsub.s32 0, %v704
        %v706 = vrot.slane %v702, %v705
        %707 = vmatprep.subr.mxu0 0.0
        %708 = vmatpush1.msra.mxu0 %v701
        %709 = vmatprep.subr.mxu0 0.0
        %710 = vmatpush1.msra.mxu0 %v700
        %711 = vmatprep.subr.mxu0 0.0
        %712 = vmatpush1.msra.mxu0 %v699
        %713 = vmatprep.subr.mxu0 0.0
        %714 = vmatpush1.msra.mxu0 %v698
        %715 = vmatprep.subr.mxu0 0.0
        %716 = vmatpush1.msra.mxu0 %v697
        %717 = vmatprep.subr.mxu0 0.0
        %718 = vmatpush1.msra.mxu0 %v696
        %719 = vmatprep.subr.mxu0 0.0
        %720 = vmatpush1.msra.mxu0 %v695
        %721 = vmatprep.subr.mxu0 0.0
        %722 = vmatpush1.msra.mxu0 %v694
        %723 = vmatprep.subr.mxu0 0.0
        %724 = vmatpush1.msra.mxu0 %v693
        %725 = vmatprep.subr.mxu0 0.0
        %726 = vmatpush1.msra.mxu0 %v692
        %727 = vmatprep.subr.mxu0 0.0
        %728 = vmatpush1.msra.mxu0 %v691
        %729 = vmatprep.subr.mxu0 0.0
        %730 = vmatpush1.msra.mxu0 %v690
        %731 = vmatprep.subr.mxu0 0.0
        %732 = vmatpush1.msra.mxu0 %v689
        %733 = vmatprep.subr.mxu0 0.0
        %734 = vmatpush1.msra.mxu0 %v688
        %735 = vmatprep.subr.mxu0 0.0
        %736 = vmatpush1.msra.mxu0 %v687
        %737 = vmatprep.subr.mxu0 0.0
        %738 = vmatpush1.msra.mxu0 %v686
        %739 = vmatprep.subr.mxu0 0.0
        %740 = vmatpush2.msra.mxu0 0.0
        %741 = vmatprep.subr.mxu0 0.0
        %742 = vmatpush2.msra.mxu0 0.0
        %743 = vmatprep.subr.mxu0 0.0
        %744 = vmatpush2.msra.mxu0 0.0
        %745 = vmatprep.subr.mxu0 0.0
        %746 = vmatpush2.msra.mxu0 0.0
        %747 = vmatprep.subr.mxu0 0.0
        %748 = vmatpush2.msra.mxu0 0.0
        %749 = vmatprep.subr.mxu0 0.0
        %750 = vmatpush2.msra.mxu0 0.0
        %751 = vmatprep.subr.mxu0 0.0
        %752 = vmatpush2.msra.mxu0 0.0
        %753 = vmatprep.subr.mxu0 0.0
        %754 = vmatpush2.msra.mxu0 0.0
        %755 = vmatprep.subr.mxu0 0.0
        %756 = vmatpush2.msra.mxu0 0.0
        %757 = vmatprep.subr.mxu0 0.0
        %758 = vmatpush2.msra.mxu0 0.0
        %759 = vmatprep.subr.mxu0 0.0
        %760 = vmatpush2.msra.mxu0 0.0
        %761 = vmatprep.subr.mxu0 0.0
        %762 = vmatpush2.msra.mxu0 0.0
        %763 = vmatprep.subr.mxu0 0.0
        %764 = vmatpush2.msra.mxu0 0.0
        %765 = vmatprep.subr.mxu0 0.0
        %766 = vmatpush2.msra.mxu0 0.0
        %767 = vmatprep.subr.mxu0 0.0
        %768 = vmatpush2.msra.mxu0 0.0
        %769 = vmatprep.subr.mxu0 0.0
        %770 = vmatpush2.msra.mxu0 0.0
        %771 = vmatprep.mubr.f32.mxu0 0.0
        %772 = vmatmul.mubr.f32.gmra.mxu0 %v653
        %v773 = vpop.f32.mrf.mxu0
        %v774 = vadd.f32 %v706, %v773
        %v775 = vpop.f32.mrf.mxu0
        %776 = vmatprep.mubr.f32.mxu0 0.0
        %777 = vmatmul.mubr.f32.gmra.mxu0 %v654
        %v778 = vpop.f32.mrf.mxu0
        %v779 = vadd.f32 %v706, %v778
        %v780 = vpop.f32.mrf.mxu0
        %781 = vmatprep.mubr.f32.mxu0 0.0
        %782 = vmatmul.mubr.f32.gmra.mxu0 %v655
        %v783 = vpop.f32.mrf.mxu0
        %v784 = vadd.f32 %v706, %v783
        %v785 = vpop.f32.mrf.mxu0
        %786 = vmatprep.mubr.f32.mxu0 0.0
        %787 = vmatmul.mubr.f32.gmra.mxu0 %v656
        %v788 = vpop.f32.mrf.mxu0
        %v789 = vadd.f32 %v706, %v788
        %v790 = vpop.f32.mrf.mxu0
        %791 = vmatprep.mubr.f32.mxu0 0.0
        %792 = vmatmul.mubr.f32.gmra.mxu0 %v657
        %v793 = vpop.f32.mrf.mxu0
        %v794 = vadd.f32 %v706, %v793
        %v795 = vpop.f32.mrf.mxu0
        %796 = vmatprep.mubr.f32.mxu0 0.0
        %797 = vmatmul.mubr.f32.gmra.mxu0 %v658
        %v798 = vpop.f32.mrf.mxu0
        %v799 = vadd.f32 %v706, %v798
        %v800 = vpop.f32.mrf.mxu0
        %801 = vmatprep.mubr.f32.mxu0 0.0
        %802 = vmatmul.mubr.f32.gmra.mxu0 %v659
        %v803 = vpop.f32.mrf.mxu0
        %v804 = vadd.f32 %v706, %v803
        %v805 = vpop.f32.mrf.mxu0
        %806 = vmatprep.mubr.f32.mxu0 0.0
        %807 = vmatmul.mubr.f32.gmra.mxu0 %v660
        %v808 = vpop.f32.mrf.mxu0
        %v809 = vadd.f32 %v706, %v808
        %v810 = vpop.f32.mrf.mxu0
        %811 = vmatprep.mubr.f32.mxu0 0.0
        %812 = vmatmul.mubr.f32.gmra.mxu0 %v661
        %v813 = vpop.f32.mrf.mxu0
        %v814 = vadd.f32 %v706, %v813
        %v815 = vpop.f32.mrf.mxu0
        %816 = vmatprep.mubr.f32.mxu0 0.0
        %817 = vmatmul.mubr.f32.gmra.mxu0 %v662
        %v818 = vpop.f32.mrf.mxu0
        %v819 = vadd.f32 %v706, %v818
        %v820 = vpop.f32.mrf.mxu0
        %821 = vmatprep.mubr.f32.mxu0 0.0
        %822 = vmatmul.mubr.f32.gmra.mxu0 %v663
        %v823 = vpop.f32.mrf.mxu0
        %v824 = vadd.f32 %v706, %v823
        %v825 = vpop.f32.mrf.mxu0
        %826 = vmatprep.mubr.f32.mxu0 0.0
        %827 = vmatmul.mubr.f32.gmra.mxu0 %v664
        %v828 = vpop.f32.mrf.mxu0
        %v829 = vadd.f32 %v706, %v828
        %v830 = vpop.f32.mrf.mxu0
        %831 = vmatprep.mubr.f32.mxu0 0.0
        %832 = vmatmul.mubr.f32.gmra.mxu0 %v665
        %v833 = vpop.f32.mrf.mxu0
        %v834 = vadd.f32 %v706, %v833
        %v835 = vpop.f32.mrf.mxu0
        %836 = vmatprep.mubr.f32.mxu0 0.0
        %837 = vmatmul.mubr.f32.gmra.mxu0 %v666
        %v838 = vpop.f32.mrf.mxu0
        %v839 = vadd.f32 %v706, %v838
        %v840 = vpop.f32.mrf.mxu0
        %841 = vmatprep.mubr.f32.mxu0 0.0
        %842 = vmatmul.mubr.f32.gmra.mxu0 %v667
        %v843 = vpop.f32.mrf.mxu0
        %v844 = vadd.f32 %v706, %v843
        %v845 = vpop.f32.mrf.mxu0
        %846 = vmatprep.mubr.f32.mxu0 0.0
        %847 = vmatmul.mubr.f32.gmra.mxu0 %v668
        %v848 = vpop.f32.mrf.mxu0
        %v849 = vadd.f32 %v706, %v848
        %v850 = vpop.f32.mrf.mxu0
        %851 = vmatprep.mubr.f32.mxu0 0.0
        %852 = vmatmul.mubr.f32.gmra.mxu0 %v669
        %v853 = vpop.f32.mrf.mxu0
        %v854 = vadd.f32 %v706, %v853
        %v855 = vpop.f32.mrf.mxu0
        %856 = vmatprep.mubr.f32.mxu0 0.0
        %857 = vmatmul.mubr.f32.gmra.mxu0 %v670
        %v858 = vpop.f32.mrf.mxu0
        %v859 = vadd.f32 %v706, %v858
        %v860 = vpop.f32.mrf.mxu0
        %861 = vmatprep.mubr.f32.mxu0 0.0
        %862 = vmatmul.mubr.f32.gmra.mxu0 %v671
        %v863 = vpop.f32.mrf.mxu0
        %v864 = vadd.f32 %v706, %v863
        %v865 = vpop.f32.mrf.mxu0
        %866 = vmatprep.mubr.f32.mxu0 0.0
        %867 = vmatmul.mubr.f32.gmra.mxu0 %v672
        %v868 = vpop.f32.mrf.mxu0
        %v869 = vadd.f32 %v706, %v868
        %v870 = vpop.f32.mrf.mxu0
        %871 = vmatprep.mubr.f32.mxu0 0.0
        %872 = vmatmul.mubr.f32.gmra.mxu0 %v673
        %v873 = vpop.f32.mrf.mxu0
        %v874 = vadd.f32 %v706, %v873
        %v875 = vpop.f32.mrf.mxu0
        %876 = vmatprep.mubr.f32.mxu0 0.0
        %877 = vmatmul.mubr.f32.gmra.mxu0 %v674
        %v878 = vpop.f32.mrf.mxu0
        %v879 = vadd.f32 %v706, %v878
        %v880 = vpop.f32.mrf.mxu0
        %881 = vmatprep.mubr.f32.mxu0 0.0
        %882 = vmatmul.mubr.f32.gmra.mxu0 %v675
        %v883 = vpop.f32.mrf.mxu0
        %v884 = vadd.f32 %v706, %v883
        %v885 = vpop.f32.mrf.mxu0
        %886 = vmatprep.mubr.f32.mxu0 0.0
        %887 = vmatmul.mubr.f32.gmra.mxu0 %v676
        %v888 = vpop.f32.mrf.mxu0
        %v889 = vadd.f32 %v706, %v888
        %v890 = vpop.f32.mrf.mxu0
        %891 = vmatprep.mubr.f32.mxu0 0.0
        %892 = vmatmul.mubr.f32.gmra.mxu0 %v677
        %v893 = vpop.f32.mrf.mxu0
        %v894 = vadd.f32 %v706, %v893
        %v895 = vpop.f32.mrf.mxu0
        %896 = vmatprep.mubr.f32.mxu0 0.0
        %897 = vmatmul.mubr.f32.gmra.mxu0 %v678
        %v898 = vpop.f32.mrf.mxu0
        %v899 = vadd.f32 %v706, %v898
        %v900 = vpop.f32.mrf.mxu0
        %901 = vmatprep.mubr.f32.mxu0 0.0
        %902 = vmatmul.mubr.f32.gmra.mxu0 %v679
        %v903 = vpop.f32.mrf.mxu0
        %v904 = vadd.f32 %v706, %v903
        %v905 = vpop.f32.mrf.mxu0
        %906 = vmatprep.mubr.f32.mxu0 0.0
        %907 = vmatmul.mubr.f32.gmra.mxu0 %v680
        %v908 = vpop.f32.mrf.mxu0
        %v909 = vadd.f32 %v706, %v908
        %v910 = vpop.f32.mrf.mxu0
        %911 = vmatprep.mubr.f32.mxu0 0.0
        %912 = vmatmul.mubr.f32.gmra.mxu0 %v681
        %v913 = vpop.f32.mrf.mxu0
        %v914 = vadd.f32 %v706, %v913
        %v915 = vpop.f32.mrf.mxu0
        %916 = vmatprep.mubr.f32.mxu0 0.0
        %917 = vmatmul.mubr.f32.gmra.mxu0 %v682
        %v918 = vpop.f32.mrf.mxu0
        %v919 = vadd.f32 %v706, %v918
        %v920 = vpop.f32.mrf.mxu0
        %921 = vmatprep.mubr.f32.mxu0 0.0
        %922 = vmatmul.mubr.f32.gmra.mxu0 %v683
        %v923 = vpop.f32.mrf.mxu0
        %v924 = vadd.f32 %v706, %v923
        %v925 = vpop.f32.mrf.mxu0
        %926 = vmatprep.mubr.f32.mxu0 0.0
        %927 = vmatmul.mubr.f32.gmra.mxu0 %v684
        %v928 = vpop.f32.mrf.mxu0
        %v929 = vadd.f32 %v706, %v928
        %v930 = vpop.f32.mrf.mxu0
        %931 = vdwg.mxu0
        %v932 = vtanh.pop %v774
        %v933 = vtanh.pop %v779
        %v934 = vtanh.pop %v784
        %v935 = vtanh.pop %v789
        %v936 = vtanh.pop %v794
        %v937 = vtanh.pop %v799
        %v938 = vtanh.pop %v804
        %v939 = vtanh.pop %v809
        %v940 = vtanh.pop %v814
        %v941 = vtanh.pop %v819
        %v942 = vtanh.pop %v824
        %v943 = vtanh.pop %v829
        %v944 = vtanh.pop %v834
        %v945 = vtanh.pop %v839
        %v946 = vtanh.pop %v844
        %v947 = vtanh.pop %v849
        %v948 = vtanh.pop %v854
        %v949 = vtanh.pop %v859
        %v950 = vtanh.pop %v864
        %v951 = vtanh.pop %v869
        %v952 = vtanh.pop %v874
        %v953 = vtanh.pop %v879
        %v954 = vtanh.pop %v884
        %v955 = vtanh.pop %v889
        %v956 = vtanh.pop %v894
        %v957 = vtanh.pop %v899
        %v958 = vtanh.pop %v904
        %v959 = vtanh.pop %v909
        %v960 = vtanh.pop %v914
        %v961 = vtanh.pop %v919
        %v962 = vtanh.pop %v924
        %v963 = vtanh.pop %v929
        %v964 = vld [vmem:[#allocation8] sm:$0xff]
        %v965 = vld [vmem:[#allocation8 + $0x8] sm:$0xff]
        %v966 = vld [vmem:[#allocation8 + $0x10] sm:$0xff]
        %v967 = vld [vmem:[#allocation8 + $0x18] sm:$0xff]
        %v968 = vld [vmem:[#allocation8 + $0x20] sm:$0xff]
        %v969 = vld [vmem:[#allocation8 + $0x28] sm:$0xff]
        %v970 = vld [vmem:[#allocation8 + $0x30] sm:$0xff]
        %v971 = vld [vmem:[#allocation8 + $0x38] sm:$0xff]
        %v972 = vld [vmem:[#allocation8 + $0x40] sm:$0xff]
        %v973 = vld [vmem:[#allocation8 + $0x48] sm:$0xff]
        %v974 = vld [vmem:[#allocation8 + $0x50] sm:$0xff]
        %v975 = vld [vmem:[#allocation8 + $0x58] sm:$0xff]
        %v976 = vld [vmem:[#allocation8 + $0x60] sm:$0xff]
        %v977 = vld [vmem:[#allocation8 + $0x68] sm:$0xff]
        %v978 = vld [vmem:[#allocation8 + $0x70] sm:$0xff]
        %v979 = vld [vmem:[#allocation8 + $0x78] sm:$0xff]
        %v980 = vld [vmem:[#allocation8 + $0x80] sm:$0xff]
        %v981 = vld [vmem:[#allocation8 + $0x88] sm:$0xff]
        %v982 = vld [vmem:[#allocation8 + $0x90] sm:$0xff]
        %v983 = vld [vmem:[#allocation8 + $0x98] sm:$0xff]
        %v984 = vld [vmem:[#allocation8 + $0xa0] sm:$0xff]
        %v985 = vld [vmem:[#allocation8 + $0xa8] sm:$0xff]
        %v986 = vld [vmem:[#allocation8 + $0xb0] sm:$0xff]
        %v987 = vld [vmem:[#allocation8 + $0xb8] sm:$0xff]
        %v988 = vld [vmem:[#allocation8 + $0xc0] sm:$0xff]
        %v989 = vld [vmem:[#allocation8 + $0xc8] sm:$0xff]
        %v990 = vld [vmem:[#allocation8 + $0xd0] sm:$0xff]
        %v991 = vld [vmem:[#allocation8 + $0xd8] sm:$0xff]
        %v992 = vld [vmem:[#allocation8 + $0xe0] sm:$0xff]
        %v993 = vld [vmem:[#allocation8 + $0xe8] sm:$0xff]
        %v994 = vld [vmem:[#allocation8 + $0xf0] sm:$0xff]
        %v995 = vld [vmem:[#allocation8 + $0xf8] sm:$0xff]
        %996 = vmatprep.subr.mxu0 %v995
        %997 = vmatpush1.msra.mxu0 %v994
        %998 = vmatprep.subr.mxu0 %v993
        %999 = vmatpush1.msra.mxu0 %v992
        %1000 = vmatprep.subr.mxu0 %v991
        %1001 = vmatpush1.msra.mxu0 %v990
        %1002 = vmatprep.subr.mxu0 %v989
        %1003 = vmatpush1.msra.mxu0 %v988
        %1004 = vmatprep.subr.mxu0 %v987
        %1005 = vmatpush1.msra.mxu0 %v986
        %1006 = vmatprep.subr.mxu0 %v985
        %1007 = vmatpush1.msra.mxu0 %v984
        %1008 = vmatprep.subr.mxu0 %v983
        %1009 = vmatpush1.msra.mxu0 %v982
        %1010 = vmatprep.subr.mxu0 %v981
        %1011 = vmatpush1.msra.mxu0 %v980
        %1012 = vmatprep.subr.mxu0 %v979
        %1013 = vmatpush1.msra.mxu0 %v978
        %1014 = vmatprep.subr.mxu0 %v977
        %1015 = vmatpush1.msra.mxu0 %v976
        %1016 = vmatprep.subr.mxu0 %v975
        %1017 = vmatpush1.msra.mxu0 %v974
        %1018 = vmatprep.subr.mxu0 %v973
        %1019 = vmatpush1.msra.mxu0 %v972
        %1020 = vmatprep.subr.mxu0 %v971
        %1021 = vmatpush1.msra.mxu0 %v970
        %1022 = vmatprep.subr.mxu0 %v969
        %1023 = vmatpush1.msra.mxu0 %v968
        %1024 = vmatprep.subr.mxu0 %v967
        %1025 = vmatpush1.msra.mxu0 %v966
        %1026 = vmatprep.subr.mxu0 %v965
        %1027 = vmatpush1.msra.mxu0 %v964
        %1028 = vmatprep.subr.mxu0 0.0
        %1029 = vmatpush2.msra.mxu0 0.0
        %1030 = vmatprep.subr.mxu0 0.0
        %1031 = vmatpush2.msra.mxu0 0.0
        %1032 = vmatprep.subr.mxu0 0.0
        %1033 = vmatpush2.msra.mxu0 0.0
        %1034 = vmatprep.subr.mxu0 0.0
        %1035 = vmatpush2.msra.mxu0 0.0
        %1036 = vmatprep.subr.mxu0 0.0
        %1037 = vmatpush2.msra.mxu0 0.0
        %1038 = vmatprep.subr.mxu0 0.0
        %1039 = vmatpush2.msra.mxu0 0.0
        %1040 = vmatprep.subr.mxu0 0.0
        %1041 = vmatpush2.msra.mxu0 0.0
        %1042 = vmatprep.subr.mxu0 0.0
        %1043 = vmatpush2.msra.mxu0 0.0
        %1044 = vmatprep.subr.mxu0 0.0
        %1045 = vmatpush2.msra.mxu0 0.0
        %1046 = vmatprep.subr.mxu0 0.0
        %1047 = vmatpush2.msra.mxu0 0.0
        %1048 = vmatprep.subr.mxu0 0.0
        %1049 = vmatpush2.msra.mxu0 0.0
        %1050 = vmatprep.subr.mxu0 0.0
        %1051 = vmatpush2.msra.mxu0 0.0
        %1052 = vmatprep.subr.mxu0 0.0
        %1053 = vmatpush2.msra.mxu0 0.0
        %1054 = vmatprep.subr.mxu0 0.0
        %1055 = vmatpush2.msra.mxu0 0.0
        %1056 = vmatprep.subr.mxu0 0.0
        %1057 = vmatpush2.msra.mxu0 0.0
        %1058 = vmatprep.subr.mxu0 0.0
        %1059 = vmatpush2.msra.mxu0 0.0
        %1060 = vmatprep.mubr.f32.mxu0 0.0
        %1061 = vmatmul.mubr.f32.gmra.mxu0 %v932
        %v1062 = vpop.f32.mrf.mxu0
        %v1063 = vadd.f32 0.0, %v1062
        %v1064 = vpop.f32.mrf.mxu0
        %v1065 = vadd.f32 0.0, %v1064
        %1066 = vmatprep.mubr.f32.mxu0 0.0
        %1067 = vmatmul.mubr.f32.gmra.mxu0 %v933
        %v1068 = vpop.f32.mrf.mxu0
        %v1069 = vadd.f32 0.0, %v1068
        %v1070 = vpop.f32.mrf.mxu0
        %v1071 = vadd.f32 0.0, %v1070
        %1072 = vmatprep.mubr.f32.mxu0 0.0
        %1073 = vmatmul.mubr.f32.gmra.mxu0 %v934
        %v1074 = vpop.f32.mrf.mxu0
        %v1075 = vadd.f32 0.0, %v1074
        %v1076 = vpop.f32.mrf.mxu0
        %v1077 = vadd.f32 0.0, %v1076
        %1078 = vmatprep.mubr.f32.mxu0 0.0
        %1079 = vmatmul.mubr.f32.gmra.mxu0 %v935
        %v1080 = vpop.f32.mrf.mxu0
        %v1081 = vadd.f32 0.0, %v1080
        %v1082 = vpop.f32.mrf.mxu0
        %v1083 = vadd.f32 0.0, %v1082
        %1084 = vmatprep.mubr.f32.mxu0 0.0
        %1085 = vmatmul.mubr.f32.gmra.mxu0 %v936
        %v1086 = vpop.f32.mrf.mxu0
        %v1087 = vadd.f32 0.0, %v1086
        %v1088 = vpop.f32.mrf.mxu0
        %v1089 = vadd.f32 0.0, %v1088
        %1090 = vmatprep.mubr.f32.mxu0 0.0
        %1091 = vmatmul.mubr.f32.gmra.mxu0 %v937
        %v1092 = vpop.f32.mrf.mxu0
        %v1093 = vadd.f32 0.0, %v1092
        %v1094 = vpop.f32.mrf.mxu0
        %v1095 = vadd.f32 0.0, %v1094
        %1096 = vmatprep.mubr.f32.mxu0 0.0
        %1097 = vmatmul.mubr.f32.gmra.mxu0 %v938
        %v1098 = vpop.f32.mrf.mxu0
        %v1099 = vadd.f32 0.0, %v1098
        %v1100 = vpop.f32.mrf.mxu0
        %v1101 = vadd.f32 0.0, %v1100
        %1102 = vmatprep.mubr.f32.mxu0 0.0
        %1103 = vmatmul.mubr.f32.gmra.mxu0 %v939
        %v1104 = vpop.f32.mrf.mxu0
        %v1105 = vadd.f32 0.0, %v1104
        %v1106 = vpop.f32.mrf.mxu0
        %v1107 = vadd.f32 0.0, %v1106
        %1108 = vmatprep.mubr.f32.mxu0 0.0
        %1109 = vmatmul.mubr.f32.gmra.mxu0 %v940
        %v1110 = vpop.f32.mrf.mxu0
        %v1111 = vadd.f32 0.0, %v1110
        %v1112 = vpop.f32.mrf.mxu0
        %v1113 = vadd.f32 0.0, %v1112
        %1114 = vmatprep.mubr.f32.mxu0 0.0
        %1115 = vmatmul.mubr.f32.gmra.mxu0 %v941
        %v1116 = vpop.f32.mrf.mxu0
        %v1117 = vadd.f32 0.0, %v1116
        %v1118 = vpop.f32.mrf.mxu0
        %v1119 = vadd.f32 0.0, %v1118
        %1120 = vmatprep.mubr.f32.mxu0 0.0
        %1121 = vmatmul.mubr.f32.gmra.mxu0 %v942
        %v1122 = vpop.f32.mrf.mxu0
        %v1123 = vadd.f32 0.0, %v1122
        %v1124 = vpop.f32.mrf.mxu0
        %v1125 = vadd.f32 0.0, %v1124
        %1126 = vmatprep.mubr.f32.mxu0 0.0
        %1127 = vmatmul.mubr.f32.gmra.mxu0 %v943
        %v1128 = vpop.f32.mrf.mxu0
        %v1129 = vadd.f32 0.0, %v1128
        %v1130 = vpop.f32.mrf.mxu0
        %v1131 = vadd.f32 0.0, %v1130
        %1132 = vmatprep.mubr.f32.mxu0 0.0
        %1133 = vmatmul.mubr.f32.gmra.mxu0 %v944
        %v1134 = vpop.f32.mrf.mxu0
        %v1135 = vadd.f32 0.0, %v1134
        %v1136 = vpop.f32.mrf.mxu0
        %v1137 = vadd.f32 0.0, %v1136
        %1138 = vmatprep.mubr.f32.mxu0 0.0
        %1139 = vmatmul.mubr.f32.gmra.mxu0 %v945
        %v1140 = vpop.f32.mrf.mxu0
        %v1141 = vadd.f32 0.0, %v1140
        %v1142 = vpop.f32.mrf.mxu0
        %v1143 = vadd.f32 0.0, %v1142
        %1144 = vmatprep.mubr.f32.mxu0 0.0
        %1145 = vmatmul.mubr.f32.gmra.mxu0 %v946
        %v1146 = vpop.f32.mrf.mxu0
        %v1147 = vadd.f32 0.0, %v1146
        %v1148 = vpop.f32.mrf.mxu0
        %v1149 = vadd.f32 0.0, %v1148
        %1150 = vmatprep.mubr.f32.mxu0 0.0
        %1151 = vmatmul.mubr.f32.gmra.mxu0 %v947
        %v1152 = vpop.f32.mrf.mxu0
        %v1153 = vadd.f32 0.0, %v1152
        %v1154 = vpop.f32.mrf.mxu0
        %v1155 = vadd.f32 0.0, %v1154
        %1156 = vmatprep.mubr.f32.mxu0 0.0
        %1157 = vmatmul.mubr.f32.gmra.mxu0 %v948
        %v1158 = vpop.f32.mrf.mxu0
        %v1159 = vadd.f32 0.0, %v1158
        %v1160 = vpop.f32.mrf.mxu0
        %v1161 = vadd.f32 0.0, %v1160
        %1162 = vmatprep.mubr.f32.mxu0 0.0
        %1163 = vmatmul.mubr.f32.gmra.mxu0 %v949
        %v1164 = vpop.f32.mrf.mxu0
        %v1165 = vadd.f32 0.0, %v1164
        %v1166 = vpop.f32.mrf.mxu0
        %v1167 = vadd.f32 0.0, %v1166
        %1168 = vmatprep.mubr.f32.mxu0 0.0
        %1169 = vmatmul.mubr.f32.gmra.mxu0 %v950
        %v1170 = vpop.f32.mrf.mxu0
        %v1171 = vadd.f32 0.0, %v1170
        %v1172 = vpop.f32.mrf.mxu0
        %v1173 = vadd.f32 0.0, %v1172
        %1174 = vmatprep.mubr.f32.mxu0 0.0
        %1175 = vmatmul.mubr.f32.gmra.mxu0 %v951
        %v1176 = vpop.f32.mrf.mxu0
        %v1177 = vadd.f32 0.0, %v1176
        %v1178 = vpop.f32.mrf.mxu0
        %v1179 = vadd.f32 0.0, %v1178
        %1180 = vmatprep.mubr.f32.mxu0 0.0
        %1181 = vmatmul.mubr.f32.gmra.mxu0 %v952
        %v1182 = vpop.f32.mrf.mxu0
        %v1183 = vadd.f32 0.0, %v1182
        %v1184 = vpop.f32.mrf.mxu0
        %v1185 = vadd.f32 0.0, %v1184
        %1186 = vmatprep.mubr.f32.mxu0 0.0
        %1187 = vmatmul.mubr.f32.gmra.mxu0 %v953
        %v1188 = vpop.f32.mrf.mxu0
        %v1189 = vadd.f32 0.0, %v1188
        %v1190 = vpop.f32.mrf.mxu0
        %v1191 = vadd.f32 0.0, %v1190
        %1192 = vmatprep.mubr.f32.mxu0 0.0
        %1193 = vmatmul.mubr.f32.gmra.mxu0 %v954
        %v1194 = vpop.f32.mrf.mxu0
        %v1195 = vadd.f32 0.0, %v1194
        %v1196 = vpop.f32.mrf.mxu0
        %v1197 = vadd.f32 0.0, %v1196
        %1198 = vmatprep.mubr.f32.mxu0 0.0
        %1199 = vmatmul.mubr.f32.gmra.mxu0 %v955
        %v1200 = vpop.f32.mrf.mxu0
        %v1201 = vadd.f32 0.0, %v1200
        %v1202 = vpop.f32.mrf.mxu0
        %v1203 = vadd.f32 0.0, %v1202
        %1204 = vmatprep.mubr.f32.mxu0 0.0
        %1205 = vmatmul.mubr.f32.gmra.mxu0 %v956
        %v1206 = vpop.f32.mrf.mxu0
        %v1207 = vadd.f32 0.0, %v1206
        %v1208 = vpop.f32.mrf.mxu0
        %v1209 = vadd.f32 0.0, %v1208
        %1210 = vmatprep.mubr.f32.mxu0 0.0
        %1211 = vmatmul.mubr.f32.gmra.mxu0 %v957
        %v1212 = vpop.f32.mrf.mxu0
        %v1213 = vadd.f32 0.0, %v1212
        %v1214 = vpop.f32.mrf.mxu0
        %v1215 = vadd.f32 0.0, %v1214
        %1216 = vmatprep.mubr.f32.mxu0 0.0
        %1217 = vmatmul.mubr.f32.gmra.mxu0 %v958
        %v1218 = vpop.f32.mrf.mxu0
        %v1219 = vadd.f32 0.0, %v1218
        %v1220 = vpop.f32.mrf.mxu0
        %v1221 = vadd.f32 0.0, %v1220
        %1222 = vmatprep.mubr.f32.mxu0 0.0
        %1223 = vmatmul.mubr.f32.gmra.mxu0 %v959
        %v1224 = vpop.f32.mrf.mxu0
        %v1225 = vadd.f32 0.0, %v1224
        %v1226 = vpop.f32.mrf.mxu0
        %v1227 = vadd.f32 0.0, %v1226
        %1228 = vmatprep.mubr.f32.mxu0 0.0
        %1229 = vmatmul.mubr.f32.gmra.mxu0 %v960
        %v1230 = vpop.f32.mrf.mxu0
        %v1231 = vadd.f32 0.0, %v1230
        %v1232 = vpop.f32.mrf.mxu0
        %v1233 = vadd.f32 0.0, %v1232
        %1234 = vmatprep.mubr.f32.mxu0 0.0
        %1235 = vmatmul.mubr.f32.gmra.mxu0 %v961
        %v1236 = vpop.f32.mrf.mxu0
        %v1237 = vadd.f32 0.0, %v1236
        %v1238 = vpop.f32.mrf.mxu0
        %v1239 = vadd.f32 0.0, %v1238
        %1240 = vmatprep.mubr.f32.mxu0 0.0
        %1241 = vmatmul.mubr.f32.gmra.mxu0 %v962
        %v1242 = vpop.f32.mrf.mxu0
        %v1243 = vadd.f32 0.0, %v1242
        %v1244 = vpop.f32.mrf.mxu0
        %v1245 = vadd.f32 0.0, %v1244
        %1246 = vmatprep.mubr.f32.mxu0 0.0
        %1247 = vmatmul.mubr.f32.gmra.mxu0 %v963
        %v1248 = vpop.f32.mrf.mxu0
        %v1249 = vadd.f32 0.0, %v1248
        %v1250 = vpop.f32.mrf.mxu0
        %v1251 = vadd.f32 0.0, %v1250
        %1252 = vdwg.mxu0
        %v1253 = vld [vmem:[#allocation5 + $0x4] sm:$0x1]
        %v1254 = vlaneseq
        %v1255 = vshrl.u32 %v1254, 7
        %v1256 = vsub.s32 0, %v1255
        %v1257 = vrot.slane %v1253, %v1256
        %v1258 = vadd.f32 %v1063, %v1257
        %v1259 = vadd.f32 %v1069, %v1257
        %v1260 = vadd.f32 %v1075, %v1257
        %v1261 = vadd.f32 %v1081, %v1257
        %v1262 = vadd.f32 %v1087, %v1257
        %v1263 = vadd.f32 %v1093, %v1257
        %v1264 = vadd.f32 %v1099, %v1257
        %v1265 = vadd.f32 %v1105, %v1257
        %v1266 = vadd.f32 %v1111, %v1257
        %v1267 = vadd.f32 %v1117, %v1257
        %v1268 = vadd.f32 %v1123, %v1257
        %v1269 = vadd.f32 %v1129, %v1257
        %v1270 = vadd.f32 %v1135, %v1257
        %v1271 = vadd.f32 %v1141, %v1257
        %v1272 = vadd.f32 %v1147, %v1257
        %v1273 = vadd.f32 %v1153, %v1257
        %v1274 = vadd.f32 %v1159, %v1257
        %v1275 = vadd.f32 %v1165, %v1257
        %v1276 = vadd.f32 %v1171, %v1257
        %v1277 = vadd.f32 %v1177, %v1257
        %v1278 = vadd.f32 %v1183, %v1257
        %v1279 = vadd.f32 %v1189, %v1257
        %v1280 = vadd.f32 %v1195, %v1257
        %v1281 = vadd.f32 %v1201, %v1257
        %v1282 = vadd.f32 %v1207, %v1257
        %v1283 = vadd.f32 %v1213, %v1257
        %v1284 = vadd.f32 %v1219, %v1257
        %v1285 = vadd.f32 %v1225, %v1257
        %v1286 = vadd.f32 %v1231, %v1257
        %v1287 = vadd.f32 %v1237, %v1257
        %v1288 = vadd.f32 %v1243, %v1257
        %v1289 = vadd.f32 %v1249, %v1257
        %v1290 = vld [vmem:[#allocation5 + $0x5] sm:$0x1]
        %v1291 = vlaneseq
        %v1292 = vshrl.u32 %v1291, 7
        %v1293 = vsub.s32 0, %v1292
        %v1294 = vrot.slane %v1290, %v1293
        %v1295 = vadd.f32 %v1065, %v1294
        %v1296 = vadd.f32 %v1071, %v1294
        %v1297 = vadd.f32 %v1077, %v1294
        %v1298 = vadd.f32 %v1083, %v1294
        %v1299 = vadd.f32 %v1089, %v1294
        %v1300 = vadd.f32 %v1095, %v1294
        %v1301 = vadd.f32 %v1101, %v1294
        %v1302 = vadd.f32 %v1107, %v1294
        %v1303 = vadd.f32 %v1113, %v1294
        %v1304 = vadd.f32 %v1119, %v1294
        %v1305 = vadd.f32 %v1125, %v1294
        %v1306 = vadd.f32 %v1131, %v1294
        %v1307 = vadd.f32 %v1137, %v1294
        %v1308 = vadd.f32 %v1143, %v1294
        %v1309 = vadd.f32 %v1149, %v1294
        %v1310 = vadd.f32 %v1155, %v1294
        %v1311 = vadd.f32 %v1161, %v1294
        %v1312 = vadd.f32 %v1167, %v1294
        %v1313 = vadd.f32 %v1173, %v1294
        %v1314 = vadd.f32 %v1179, %v1294
        %v1315 = vadd.f32 %v1185, %v1294
        %v1316 = vadd.f32 %v1191, %v1294
        %v1317 = vadd.f32 %v1197, %v1294
        %v1318 = vadd.f32 %v1203, %v1294
        %v1319 = vadd.f32 %v1209, %v1294
        %v1320 = vadd.f32 %v1215, %v1294
        %v1321 = vadd.f32 %v1221, %v1294
        %v1322 = vadd.f32 %v1227, %v1294
        %v1323 = vadd.f32 %v1233, %v1294
        %v1324 = vadd.f32 %v1239, %v1294
        %v1325 = vadd.f32 %v1245, %v1294
        %v1326 = vadd.f32 %v1251, %v1294
        %v1327 = vand.u32 2147483647, %v1295
        %v1328 = vand.u32 2147483647, %v1296
        %v1329 = vand.u32 2147483647, %v1297
        %v1330 = vand.u32 2147483647, %v1298
        %v1331 = vand.u32 2147483647, %v1299
        %v1332 = vand.u32 2147483647, %v1300
        %v1333 = vand.u32 2147483647, %v1301
        %v1334 = vand.u32 2147483647, %v1302
        %v1335 = vand.u32 2147483647, %v1303
        %v1336 = vand.u32 2147483647, %v1304
        %v1337 = vand.u32 2147483647, %v1305
        %v1338 = vand.u32 2147483647, %v1306
        %v1339 = vand.u32 2147483647, %v1307
        %v1340 = vand.u32 2147483647, %v1308
        %v1341 = vand.u32 2147483647, %v1309
        %v1342 = vand.u32 2147483647, %v1310
        %v1343 = vand.u32 2147483647, %v1311
        %v1344 = vand.u32 2147483647, %v1312
        %v1345 = vand.u32 2147483647, %v1313
        %v1346 = vand.u32 2147483647, %v1314
        %v1347 = vand.u32 2147483647, %v1315
        %v1348 = vand.u32 2147483647, %v1316
        %v1349 = vand.u32 2147483647, %v1317
        %v1350 = vand.u32 2147483647, %v1318
        %v1351 = vand.u32 2147483647, %v1319
        %v1352 = vand.u32 2147483647, %v1320
        %v1353 = vand.u32 2147483647, %v1321
        %v1354 = vand.u32 2147483647, %v1322
        %v1355 = vand.u32 2147483647, %v1323
        %v1356 = vand.u32 2147483647, %v1324
        %v1357 = vand.u32 2147483647, %v1325
        %v1358 = vand.u32 2147483647, %v1326
        %v1359 = vsub.f32 0.0, %v1327
        %v1360 = vsub.f32 0.0, %v1328
        %v1361 = vsub.f32 0.0, %v1329
        %v1362 = vsub.f32 0.0, %v1330
        %v1363 = vsub.f32 0.0, %v1331
        %v1364 = vsub.f32 0.0, %v1332
        %v1365 = vsub.f32 0.0, %v1333
        %v1366 = vsub.f32 0.0, %v1334
        %v1367 = vsub.f32 0.0, %v1335
        %v1368 = vsub.f32 0.0, %v1336
        %v1369 = vsub.f32 0.0, %v1337
        %v1370 = vsub.f32 0.0, %v1338
        %v1371 = vsub.f32 0.0, %v1339
        %v1372 = vsub.f32 0.0, %v1340
        %v1373 = vsub.f32 0.0, %v1341
        %v1374 = vsub.f32 0.0, %v1342
        %v1375 = vsub.f32 0.0, %v1343
        %v1376 = vsub.f32 0.0, %v1344
        %v1377 = vsub.f32 0.0, %v1345
        %v1378 = vsub.f32 0.0, %v1346
        %v1379 = vsub.f32 0.0, %v1347
        %v1380 = vsub.f32 0.0, %v1348
        %v1381 = vsub.f32 0.0, %v1349
        %v1382 = vsub.f32 0.0, %v1350
        %v1383 = vsub.f32 0.0, %v1351
        %v1384 = vsub.f32 0.0, %v1352
        %v1385 = vsub.f32 0.0, %v1353
        %v1386 = vsub.f32 0.0, %v1354
        %v1387 = vsub.f32 0.0, %v1355
        %v1388 = vsub.f32 0.0, %v1356
        %v1389 = vsub.f32 0.0, %v1357
        %v1390 = vsub.f32 0.0, %v1358
        %v1391 = vmul.f32 %v1359, 1.442695
        %v1392 = vpow.pop %v1391
        %v1393 = vmul.f32 %v1360, 1.442695
        %v1394 = vpow.pop %v1393
        %v1395 = vmul.f32 %v1361, 1.442695
        %v1396 = vpow.pop %v1395
        %v1397 = vmul.f32 %v1362, 1.442695
        %v1398 = vpow.pop %v1397
        %v1399 = vmul.f32 %v1363, 1.442695
        %v1400 = vpow.pop %v1399
        %v1401 = vmul.f32 %v1364, 1.442695
        %v1402 = vpow.pop %v1401
        %v1403 = vmul.f32 %v1365, 1.442695
        %v1404 = vpow.pop %v1403
        %v1405 = vmul.f32 %v1366, 1.442695
        %v1406 = vpow.pop %v1405
        %v1407 = vmul.f32 %v1367, 1.442695
        %v1408 = vpow.pop %v1407
        %v1409 = vmul.f32 %v1368, 1.442695
        %v1410 = vpow.pop %v1409
        %v1411 = vmul.f32 %v1369, 1.442695
        %v1412 = vpow.pop %v1411
        %v1413 = vmul.f32 %v1370, 1.442695
        %v1414 = vpow.pop %v1413
        %v1415 = vmul.f32 %v1371, 1.442695
        %v1416 = vpow.pop %v1415
        %v1417 = vmul.f32 %v1372, 1.442695
        %v1418 = vpow.pop %v1417
        %v1419 = vmul.f32 %v1373, 1.442695
        %v1420 = vpow.pop %v1419
        %v1421 = vmul.f32 %v1374, 1.442695
        %v1422 = vpow.pop %v1421
        %v1423 = vmul.f32 %v1375, 1.442695
        %v1424 = vpow.pop %v1423
        %v1425 = vmul.f32 %v1376, 1.442695
        %v1426 = vpow.pop %v1425
        %v1427 = vmul.f32 %v1377, 1.442695
        %v1428 = vpow.pop %v1427
        %v1429 = vmul.f32 %v1378, 1.442695
        %v1430 = vpow.pop %v1429
        %v1431 = vmul.f32 %v1379, 1.442695
        %v1432 = vpow.pop %v1431
        %v1433 = vmul.f32 %v1380, 1.442695
        %v1434 = vpow.pop %v1433
        %v1435 = vmul.f32 %v1381, 1.442695
        %v1436 = vpow.pop %v1435
        %v1437 = vmul.f32 %v1382, 1.442695
        %v1438 = vpow.pop %v1437
        %v1439 = vmul.f32 %v1383, 1.442695
        %v1440 = vpow.pop %v1439
        %v1441 = vmul.f32 %v1384, 1.442695
        %v1442 = vpow.pop %v1441
        %v1443 = vmul.f32 %v1385, 1.442695
        %v1444 = vpow.pop %v1443
        %v1445 = vmul.f32 %v1386, 1.442695
        %v1446 = vpow.pop %v1445
        %v1447 = vmul.f32 %v1387, 1.442695
        %v1448 = vpow.pop %v1447
        %v1449 = vmul.f32 %v1388, 1.442695
        %v1450 = vpow.pop %v1449
        %v1451 = vmul.f32 %v1389, 1.442695
        %v1452 = vpow.pop %v1451
        %v1453 = vmul.f32 %v1390, 1.442695
        %v1454 = vpow.pop %v1453
        %v1455 = vadd.f32 %v1392, 1.0
        %v1456 = vadd.f32 %v1394, 1.0
        %v1457 = vadd.f32 %v1396, 1.0
        %v1458 = vadd.f32 %v1398, 1.0
        %v1459 = vadd.f32 %v1400, 1.0
        %v1460 = vadd.f32 %v1402, 1.0
        %v1461 = vadd.f32 %v1404, 1.0
        %v1462 = vadd.f32 %v1406, 1.0
        %v1463 = vadd.f32 %v1408, 1.0
        %v1464 = vadd.f32 %v1410, 1.0
        %v1465 = vadd.f32 %v1412, 1.0
        %v1466 = vadd.f32 %v1414, 1.0
        %v1467 = vadd.f32 %v1416, 1.0
        %v1468 = vadd.f32 %v1418, 1.0
        %v1469 = vadd.f32 %v1420, 1.0
        %v1470 = vadd.f32 %v1422, 1.0
        %v1471 = vadd.f32 %v1424, 1.0
        %v1472 = vadd.f32 %v1426, 1.0
        %v1473 = vadd.f32 %v1428, 1.0
        %v1474 = vadd.f32 %v1430, 1.0
        %v1475 = vadd.f32 %v1432, 1.0
        %v1476 = vadd.f32 %v1434, 1.0
        %v1477 = vadd.f32 %v1436, 1.0
        %v1478 = vadd.f32 %v1438, 1.0
        %v1479 = vadd.f32 %v1440, 1.0
        %v1480 = vadd.f32 %v1442, 1.0
        %v1481 = vadd.f32 %v1444, 1.0
        %v1482 = vadd.f32 %v1446, 1.0
        %v1483 = vadd.f32 %v1448, 1.0
        %v1484 = vadd.f32 %v1450, 1.0
        %v1485 = vadd.f32 %v1452, 1.0
        %v1486 = vadd.f32 %v1454, 1.0
        %v1487 = vrcp.pop %v1455
        %v1488 = vmul.f32 1.0, %v1487
        %v1489 = vrcp.pop %v1456
        %v1490 = vmul.f32 1.0, %v1489
        %v1491 = vrcp.pop %v1457
        %v1492 = vmul.f32 1.0, %v1491
        %v1493 = vrcp.pop %v1458
        %v1494 = vmul.f32 1.0, %v1493
        %v1495 = vrcp.pop %v1459
        %v1496 = vmul.f32 1.0, %v1495
        %v1497 = vrcp.pop %v1460
        %v1498 = vmul.f32 1.0, %v1497
        %v1499 = vrcp.pop %v1461
        %v1500 = vmul.f32 1.0, %v1499
        %v1501 = vrcp.pop %v1462
        %v1502 = vmul.f32 1.0, %v1501
        %v1503 = vrcp.pop %v1463
        %v1504 = vmul.f32 1.0, %v1503
        %v1505 = vrcp.pop %v1464
        %v1506 = vmul.f32 1.0, %v1505
        %v1507 = vrcp.pop %v1465
        %v1508 = vmul.f32 1.0, %v1507
        %v1509 = vrcp.pop %v1466
        %v1510 = vmul.f32 1.0, %v1509
        %v1511 = vrcp.pop %v1467
        %v1512 = vmul.f32 1.0, %v1511
        %v1513 = vrcp.pop %v1468
        %v1514 = vmul.f32 1.0, %v1513
        %v1515 = vrcp.pop %v1469
        %v1516 = vmul.f32 1.0, %v1515
        %v1517 = vrcp.pop %v1470
        %v1518 = vmul.f32 1.0, %v1517
        %v1519 = vrcp.pop %v1471
        %v1520 = vmul.f32 1.0, %v1519
        %v1521 = vrcp.pop %v1472
        %v1522 = vmul.f32 1.0, %v1521
        %v1523 = vrcp.pop %v1473
        %v1524 = vmul.f32 1.0, %v1523
        %v1525 = vrcp.pop %v1474
        %v1526 = vmul.f32 1.0, %v1525
        %v1527 = vrcp.pop %v1475
        %v1528 = vmul.f32 1.0, %v1527
        %v1529 = vrcp.pop %v1476
        %v1530 = vmul.f32 1.0, %v1529
        %v1531 = vrcp.pop %v1477
        %v1532 = vmul.f32 1.0, %v1531
        %v1533 = vrcp.pop %v1478
        %v1534 = vmul.f32 1.0, %v1533
        %v1535 = vrcp.pop %v1479
        %v1536 = vmul.f32 1.0, %v1535
        %v1537 = vrcp.pop %v1480
        %v1538 = vmul.f32 1.0, %v1537
        %v1539 = vrcp.pop %v1481
        %v1540 = vmul.f32 1.0, %v1539
        %v1541 = vrcp.pop %v1482
        %v1542 = vmul.f32 1.0, %v1541
        %v1543 = vrcp.pop %v1483
        %v1544 = vmul.f32 1.0, %v1543
        %v1545 = vrcp.pop %v1484
        %v1546 = vmul.f32 1.0, %v1545
        %v1547 = vrcp.pop %v1485
        %v1548 = vmul.f32 1.0, %v1547
        %v1549 = vrcp.pop %v1486
        %v1550 = vmul.f32 1.0, %v1549
        %vm1551 = vcmp.ge.f32.partialorder %v1295, 0.0
        %vm1552 = vcmp.ge.f32.partialorder %v1296, 0.0
        %vm1553 = vcmp.ge.f32.partialorder %v1297, 0.0
        %vm1554 = vcmp.ge.f32.partialorder %v1298, 0.0
        %vm1555 = vcmp.ge.f32.partialorder %v1299, 0.0
        %vm1556 = vcmp.ge.f32.partialorder %v1300, 0.0
        %vm1557 = vcmp.ge.f32.partialorder %v1301, 0.0
        %vm1558 = vcmp.ge.f32.partialorder %v1302, 0.0
        %vm1559 = vcmp.ge.f32.partialorder %v1303, 0.0
        %vm1560 = vcmp.ge.f32.partialorder %v1304, 0.0
        %vm1561 = vcmp.ge.f32.partialorder %v1305, 0.0
        %vm1562 = vcmp.ge.f32.partialorder %v1306, 0.0
        %vm1563 = vcmp.ge.f32.partialorder %v1307, 0.0
        %vm1564 = vcmp.ge.f32.partialorder %v1308, 0.0
        %vm1565 = vcmp.ge.f32.partialorder %v1309, 0.0
        %vm1566 = vcmp.ge.f32.partialorder %v1310, 0.0
        %vm1567 = vcmp.ge.f32.partialorder %v1311, 0.0
        %vm1568 = vcmp.ge.f32.partialorder %v1312, 0.0
        %vm1569 = vcmp.ge.f32.partialorder %v1313, 0.0
        %vm1570 = vcmp.ge.f32.partialorder %v1314, 0.0
        %vm1571 = vcmp.ge.f32.partialorder %v1315, 0.0
        %vm1572 = vcmp.ge.f32.partialorder %v1316, 0.0
        %vm1573 = vcmp.ge.f32.partialorder %v1317, 0.0
        %vm1574 = vcmp.ge.f32.partialorder %v1318, 0.0
        %vm1575 = vcmp.ge.f32.partialorder %v1319, 0.0
        %vm1576 = vcmp.ge.f32.partialorder %v1320, 0.0
        %vm1577 = vcmp.ge.f32.partialorder %v1321, 0.0
        %vm1578 = vcmp.ge.f32.partialorder %v1322, 0.0
        %vm1579 = vcmp.ge.f32.partialorder %v1323, 0.0
        %vm1580 = vcmp.ge.f32.partialorder %v1324, 0.0
        %vm1581 = vcmp.ge.f32.partialorder %v1325, 0.0
        %vm1582 = vcmp.ge.f32.partialorder %v1326, 0.0
        %v1583 = vmul.f32 %v1392, %v1488
        %v1584 = vmul.f32 %v1394, %v1490
        %v1585 = vmul.f32 %v1396, %v1492
        %v1586 = vmul.f32 %v1398, %v1494
        %v1587 = vmul.f32 %v1400, %v1496
        %v1588 = vmul.f32 %v1402, %v1498
        %v1589 = vmul.f32 %v1404, %v1500
        %v1590 = vmul.f32 %v1406, %v1502
        %v1591 = vmul.f32 %v1408, %v1504
        %v1592 = vmul.f32 %v1410, %v1506
        %v1593 = vmul.f32 %v1412, %v1508
        %v1594 = vmul.f32 %v1414, %v1510
        %v1595 = vmul.f32 %v1416, %v1512
        %v1596 = vmul.f32 %v1418, %v1514
        %v1597 = vmul.f32 %v1420, %v1516
        %v1598 = vmul.f32 %v1422, %v1518
        %v1599 = vmul.f32 %v1424, %v1520
        %v1600 = vmul.f32 %v1426, %v1522
        %v1601 = vmul.f32 %v1428, %v1524
        %v1602 = vmul.f32 %v1430, %v1526
        %v1603 = vmul.f32 %v1432, %v1528
        %v1604 = vmul.f32 %v1434, %v1530
        %v1605 = vmul.f32 %v1436, %v1532
        %v1606 = vmul.f32 %v1438, %v1534
        %v1607 = vmul.f32 %v1440, %v1536
        %v1608 = vmul.f32 %v1442, %v1538
        %v1609 = vmul.f32 %v1444, %v1540
        %v1610 = vmul.f32 %v1446, %v1542
        %v1611 = vmul.f32 %v1448, %v1544
        %v1612 = vmul.f32 %v1450, %v1546
        %v1613 = vmul.f32 %v1452, %v1548
        %v1614 = vmul.f32 %v1454, %v1550
        %v1615 = vsel %vm1551, %v1488, %v1583
        %v1616 = vsel %vm1552, %v1490, %v1584
        %v1617 = vsel %vm1553, %v1492, %v1585
        %v1618 = vsel %vm1554, %v1494, %v1586
        %v1619 = vsel %vm1555, %v1496, %v1587
        %v1620 = vsel %vm1556, %v1498, %v1588
        %v1621 = vsel %vm1557, %v1500, %v1589
        %v1622 = vsel %vm1558, %v1502, %v1590
        %v1623 = vsel %vm1559, %v1504, %v1591
        %v1624 = vsel %vm1560, %v1506, %v1592
        %v1625 = vsel %vm1561, %v1508, %v1593
        %v1626 = vsel %vm1562, %v1510, %v1594
        %v1627 = vsel %vm1563, %v1512, %v1595
        %v1628 = vsel %vm1564, %v1514, %v1596
        %v1629 = vsel %vm1565, %v1516, %v1597
        %v1630 = vsel %vm1566, %v1518, %v1598
        %v1631 = vsel %vm1567, %v1520, %v1599
        %v1632 = vsel %vm1568, %v1522, %v1600
        %v1633 = vsel %vm1569, %v1524, %v1601
        %v1634 = vsel %vm1570, %v1526, %v1602
        %v1635 = vsel %vm1571, %v1528, %v1603
        %v1636 = vsel %vm1572, %v1530, %v1604
        %v1637 = vsel %vm1573, %v1532, %v1605
        %v1638 = vsel %vm1574, %v1534, %v1606
        %v1639 = vsel %vm1575, %v1536, %v1607
        %v1640 = vsel %vm1576, %v1538, %v1608
        %v1641 = vsel %vm1577, %v1540, %v1609
        %v1642 = vsel %vm1578, %v1542, %v1610
        %v1643 = vsel %vm1579, %v1544, %v1611
        %v1644 = vsel %vm1580, %v1546, %v1612
        %v1645 = vsel %vm1581, %v1548, %v1613
        %v1646 = vsel %vm1582, %v1550, %v1614
        %v1647 = vmin.f32 %v1295, 0.0
        %v1648 = vmin.f32 %v1296, 0.0
        %v1649 = vmin.f32 %v1297, 0.0
        %v1650 = vmin.f32 %v1298, 0.0
        %v1651 = vmin.f32 %v1299, 0.0
        %v1652 = vmin.f32 %v1300, 0.0
        %v1653 = vmin.f32 %v1301, 0.0
        %v1654 = vmin.f32 %v1302, 0.0
        %v1655 = vmin.f32 %v1303, 0.0
        %v1656 = vmin.f32 %v1304, 0.0
        %v1657 = vmin.f32 %v1305, 0.0
        %v1658 = vmin.f32 %v1306, 0.0
        %v1659 = vmin.f32 %v1307, 0.0
        %v1660 = vmin.f32 %v1308, 0.0
        %v1661 = vmin.f32 %v1309, 0.0
        %v1662 = vmin.f32 %v1310, 0.0
        %v1663 = vmin.f32 %v1311, 0.0
        %v1664 = vmin.f32 %v1312, 0.0
        %v1665 = vmin.f32 %v1313, 0.0
        %v1666 = vmin.f32 %v1314, 0.0
        %v1667 = vmin.f32 %v1315, 0.0
        %v1668 = vmin.f32 %v1316, 0.0
        %v1669 = vmin.f32 %v1317, 0.0
        %v1670 = vmin.f32 %v1318, 0.0
        %v1671 = vmin.f32 %v1319, 0.0
        %v1672 = vmin.f32 %v1320, 0.0
        %v1673 = vmin.f32 %v1321, 0.0
        %v1674 = vmin.f32 %v1322, 0.0
        %v1675 = vmin.f32 %v1323, 0.0
        %v1676 = vmin.f32 %v1324, 0.0
        %v1677 = vmin.f32 %v1325, 0.0
        %v1678 = vmin.f32 %v1326, 0.0
        %v1679 = vlog2.pop %v1455
        %v1680 = vmul.f32 %v1679, 0.6931472
        %v1681 = vlog2.pop %v1456
        %v1682 = vmul.f32 %v1681, 0.6931472
        %v1683 = vlog2.pop %v1457
        %v1684 = vmul.f32 %v1683, 0.6931472
        %v1685 = vlog2.pop %v1458
        %v1686 = vmul.f32 %v1685, 0.6931472
        %v1687 = vlog2.pop %v1459
        %v1688 = vmul.f32 %v1687, 0.6931472
        %v1689 = vlog2.pop %v1460
        %v1690 = vmul.f32 %v1689, 0.6931472
        %v1691 = vlog2.pop %v1461
        %v1692 = vmul.f32 %v1691, 0.6931472
        %v1693 = vlog2.pop %v1462
        %v1694 = vmul.f32 %v1693, 0.6931472
        %v1695 = vlog2.pop %v1463
        %v1696 = vmul.f32 %v1695, 0.6931472
        %v1697 = vlog2.pop %v1464
        %v1698 = vmul.f32 %v1697, 0.6931472
        %v1699 = vlog2.pop %v1465
        %v1700 = vmul.f32 %v1699, 0.6931472
        %v1701 = vlog2.pop %v1466
        %v1702 = vmul.f32 %v1701, 0.6931472
        %v1703 = vlog2.pop %v1467
        %v1704 = vmul.f32 %v1703, 0.6931472
        %v1705 = vlog2.pop %v1468
        %v1706 = vmul.f32 %v1705, 0.6931472
        %v1707 = vlog2.pop %v1469
        %v1708 = vmul.f32 %v1707, 0.6931472
        %v1709 = vlog2.pop %v1470
        %v1710 = vmul.f32 %v1709, 0.6931472
        %v1711 = vlog2.pop %v1471
        %v1712 = vmul.f32 %v1711, 0.6931472
        %v1713 = vlog2.pop %v1472
        %v1714 = vmul.f32 %v1713, 0.6931472
        %v1715 = vlog2.pop %v1473
        %v1716 = vmul.f32 %v1715, 0.6931472
        %v1717 = vlog2.pop %v1474
        %v1718 = vmul.f32 %v1717, 0.6931472
        %v1719 = vlog2.pop %v1475
        %v1720 = vmul.f32 %v1719, 0.6931472
        %v1721 = vlog2.pop %v1476
        %v1722 = vmul.f32 %v1721, 0.6931472
        %v1723 = vlog2.pop %v1477
        %v1724 = vmul.f32 %v1723, 0.6931472
        %v1725 = vlog2.pop %v1478
        %v1726 = vmul.f32 %v1725, 0.6931472
        %v1727 = vlog2.pop %v1479
        %v1728 = vmul.f32 %v1727, 0.6931472
        %v1729 = vlog2.pop %v1480
        %v1730 = vmul.f32 %v1729, 0.6931472
        %v1731 = vlog2.pop %v1481
        %v1732 = vmul.f32 %v1731, 0.6931472
        %v1733 = vlog2.pop %v1482
        %v1734 = vmul.f32 %v1733, 0.6931472
        %v1735 = vlog2.pop %v1483
        %v1736 = vmul.f32 %v1735, 0.6931472
        %v1737 = vlog2.pop %v1484
        %v1738 = vmul.f32 %v1737, 0.6931472
        %v1739 = vlog2.pop %v1485
        %v1740 = vmul.f32 %v1739, 0.6931472
        %v1741 = vlog2.pop %v1486
        %v1742 = vmul.f32 %v1741, 0.6931472
        %v1743 = vsub.f32 %v1647, %v1680
        %v1744 = vsub.f32 %v1648, %v1682
        %v1745 = vsub.f32 %v1649, %v1684
        %v1746 = vsub.f32 %v1650, %v1686
        %v1747 = vsub.f32 %v1651, %v1688
        %v1748 = vsub.f32 %v1652, %v1690
        %v1749 = vsub.f32 %v1653, %v1692
        %v1750 = vsub.f32 %v1654, %v1694
        %v1751 = vsub.f32 %v1655, %v1696
        %v1752 = vsub.f32 %v1656, %v1698
        %v1753 = vsub.f32 %v1657, %v1700
        %v1754 = vsub.f32 %v1658, %v1702
        %v1755 = vsub.f32 %v1659, %v1704
        %v1756 = vsub.f32 %v1660, %v1706
        %v1757 = vsub.f32 %v1661, %v1708
        %v1758 = vsub.f32 %v1662, %v1710
        %v1759 = vsub.f32 %v1663, %v1712
        %v1760 = vsub.f32 %v1664, %v1714
        %v1761 = vsub.f32 %v1665, %v1716
        %v1762 = vsub.f32 %v1666, %v1718
        %v1763 = vsub.f32 %v1667, %v1720
        %v1764 = vsub.f32 %v1668, %v1722
        %v1765 = vsub.f32 %v1669, %v1724
        %v1766 = vsub.f32 %v1670, %v1726
        %v1767 = vsub.f32 %v1671, %v1728
        %v1768 = vsub.f32 %v1672, %v1730
        %v1769 = vsub.f32 %v1673, %v1732
        %v1770 = vsub.f32 %v1674, %v1734
        %v1771 = vsub.f32 %v1675, %v1736
        %v1772 = vsub.f32 %v1676, %v1738
        %v1773 = vsub.f32 %v1677, %v1740
        %v1774 = vsub.f32 %v1678, %v1742
        %v1775 = vmul.f32 %v1615, %v375
        %v1776 = vmul.f32 %v1616, %v376
        %v1777 = vmul.f32 %v1617, %v377
        %v1778 = vmul.f32 %v1618, %v378
        %v1779 = vmul.f32 %v1619, %v379
        %v1780 = vmul.f32 %v1620, %v380
        %v1781 = vmul.f32 %v1621, %v381
        %v1782 = vmul.f32 %v1622, %v382
        %v1783 = vmul.f32 %v1623, %v383
        %v1784 = vmul.f32 %v1624, %v384
        %v1785 = vmul.f32 %v1625, %v385
        %v1786 = vmul.f32 %v1626, %v386
        %v1787 = vmul.f32 %v1627, %v387
        %v1788 = vmul.f32 %v1628, %v388
        %v1789 = vmul.f32 %v1629, %v389
        %v1790 = vmul.f32 %v1630, %v390
        %v1791 = vmul.f32 %v1631, %v391
        %v1792 = vmul.f32 %v1632, %v392
        %v1793 = vmul.f32 %v1633, %v393
        %v1794 = vmul.f32 %v1634, %v394
        %v1795 = vmul.f32 %v1635, %v395
        %v1796 = vmul.f32 %v1636, %v396
        %v1797 = vmul.f32 %v1637, %v397
        %v1798 = vmul.f32 %v1638, %v398
        %v1799 = vmul.f32 %v1639, %v399
        %v1800 = vmul.f32 %v1640, %v400
        %v1801 = vmul.f32 %v1641, %v401
        %v1802 = vmul.f32 %v1642, %v402
        %v1803 = vmul.f32 %v1643, %v403
        %v1804 = vmul.f32 %v1644, %v404
        %v1805 = vmul.f32 %v1645, %v405
        %v1806 = vmul.f32 %v1646, %v406
        %v1807 = vsub.f32 1.0, %v1615
        %v1808 = vsub.f32 1.0, %v1616
        %v1809 = vsub.f32 1.0, %v1617
        %v1810 = vsub.f32 1.0, %v1618
        %v1811 = vsub.f32 1.0, %v1619
        %v1812 = vsub.f32 1.0, %v1620
        %v1813 = vsub.f32 1.0, %v1621
        %v1814 = vsub.f32 1.0, %v1622
        %v1815 = vsub.f32 1.0, %v1623
        %v1816 = vsub.f32 1.0, %v1624
        %v1817 = vsub.f32 1.0, %v1625
        %v1818 = vsub.f32 1.0, %v1626
        %v1819 = vsub.f32 1.0, %v1627
        %v1820 = vsub.f32 1.0, %v1628
        %v1821 = vsub.f32 1.0, %v1629
        %v1822 = vsub.f32 1.0, %v1630
        %v1823 = vsub.f32 1.0, %v1631
        %v1824 = vsub.f32 1.0, %v1632
        %v1825 = vsub.f32 1.0, %v1633
        %v1826 = vsub.f32 1.0, %v1634
        %v1827 = vsub.f32 1.0, %v1635
        %v1828 = vsub.f32 1.0, %v1636
        %v1829 = vsub.f32 1.0, %v1637
        %v1830 = vsub.f32 1.0, %v1638
        %v1831 = vsub.f32 1.0, %v1639
        %v1832 = vsub.f32 1.0, %v1640
        %v1833 = vsub.f32 1.0, %v1641
        %v1834 = vsub.f32 1.0, %v1642
        %v1835 = vsub.f32 1.0, %v1643
        %v1836 = vsub.f32 1.0, %v1644
        %v1837 = vsub.f32 1.0, %v1645
        %v1838 = vsub.f32 1.0, %v1646
        %v1839 = vmul.f32 %v1807, %v1258
        %v1840 = vmul.f32 %v1808, %v1259
        %v1841 = vmul.f32 %v1809, %v1260
        %v1842 = vmul.f32 %v1810, %v1261
        %v1843 = vmul.f32 %v1811, %v1262
        %v1844 = vmul.f32 %v1812, %v1263
        %v1845 = vmul.f32 %v1813, %v1264
        %v1846 = vmul.f32 %v1814, %v1265
        %v1847 = vmul.f32 %v1815, %v1266
        %v1848 = vmul.f32 %v1816, %v1267
        %v1849 = vmul.f32 %v1817, %v1268
        %v1850 = vmul.f32 %v1818, %v1269
        %v1851 = vmul.f32 %v1819, %v1270
        %v1852 = vmul.f32 %v1820, %v1271
        %v1853 = vmul.f32 %v1821, %v1272
        %v1854 = vmul.f32 %v1822, %v1273
        %v1855 = vmul.f32 %v1823, %v1274
        %v1856 = vmul.f32 %v1824, %v1275
        %v1857 = vmul.f32 %v1825, %v1276
        %v1858 = vmul.f32 %v1826, %v1277
        %v1859 = vmul.f32 %v1827, %v1278
        %v1860 = vmul.f32 %v1828, %v1279
        %v1861 = vmul.f32 %v1829, %v1280
        %v1862 = vmul.f32 %v1830, %v1281
        %v1863 = vmul.f32 %v1831, %v1282
        %v1864 = vmul.f32 %v1832, %v1283
        %v1865 = vmul.f32 %v1833, %v1284
        %v1866 = vmul.f32 %v1834, %v1285
        %v1867 = vmul.f32 %v1835, %v1286
        %v1868 = vmul.f32 %v1836, %v1287
        %v1869 = vmul.f32 %v1837, %v1288
        %v1870 = vmul.f32 %v1838, %v1289
        %v1871 = vadd.f32 %v1775, %v1839
        %v1872 = vadd.f32 %v1776, %v1840
        %v1873 = vadd.f32 %v1777, %v1841
        %v1874 = vadd.f32 %v1778, %v1842
        %v1875 = vadd.f32 %v1779, %v1843
        %v1876 = vadd.f32 %v1780, %v1844
        %v1877 = vadd.f32 %v1781, %v1845
        %v1878 = vadd.f32 %v1782, %v1846
        %v1879 = vadd.f32 %v1783, %v1847
        %v1880 = vadd.f32 %v1784, %v1848
        %v1881 = vadd.f32 %v1785, %v1849
        %v1882 = vadd.f32 %v1786, %v1850
        %v1883 = vadd.f32 %v1787, %v1851
        %v1884 = vadd.f32 %v1788, %v1852
        %v1885 = vadd.f32 %v1789, %v1853
        %v1886 = vadd.f32 %v1790, %v1854
        %v1887 = vadd.f32 %v1791, %v1855
        %v1888 = vadd.f32 %v1792, %v1856
        %v1889 = vadd.f32 %v1793, %v1857
        %v1890 = vadd.f32 %v1794, %v1858
        %v1891 = vadd.f32 %v1795, %v1859
        %v1892 = vadd.f32 %v1796, %v1860
        %v1893 = vadd.f32 %v1797, %v1861
        %v1894 = vadd.f32 %v1798, %v1862
        %v1895 = vadd.f32 %v1799, %v1863
        %v1896 = vadd.f32 %v1800, %v1864
        %v1897 = vadd.f32 %v1801, %v1865
        %v1898 = vadd.f32 %v1802, %v1866
        %v1899 = vadd.f32 %v1803, %v1867
        %v1900 = vadd.f32 %v1804, %v1868
        %v1901 = vadd.f32 %v1805, %v1869
        %v1902 = vadd.f32 %v1806, %v1870
        %1903 = vadd.xlane.f32.xlu0 %v1743
        %v1904 = vpop.xlane.xlu0 %1903
        %1905 = vadd.xlane.f32.xlu0 %v1744
        %v1906 = vpop.xlane.xlu0 %1905
        %1907 = vadd.xlane.f32.xlu0 %v1745
        %v1908 = vpop.xlane.xlu0 %1907
        %1909 = vadd.xlane.f32.xlu0 %v1746
        %v1910 = vpop.xlane.xlu0 %1909
        %1911 = vadd.xlane.f32.xlu0 %v1747
        %v1912 = vpop.xlane.xlu0 %1911
        %1913 = vadd.xlane.f32.xlu0 %v1748
        %v1914 = vpop.xlane.xlu0 %1913
        %1915 = vadd.xlane.f32.xlu0 %v1749
        %v1916 = vpop.xlane.xlu0 %1915
        %1917 = vadd.xlane.f32.xlu0 %v1750
        %v1918 = vpop.xlane.xlu0 %1917
        %1919 = vadd.xlane.f32.xlu0 %v1751
        %v1920 = vpop.xlane.xlu0 %1919
        %1921 = vadd.xlane.f32.xlu0 %v1752
        %v1922 = vpop.xlane.xlu0 %1921
        %1923 = vadd.xlane.f32.xlu0 %v1753
        %v1924 = vpop.xlane.xlu0 %1923
        %1925 = vadd.xlane.f32.xlu0 %v1754
        %v1926 = vpop.xlane.xlu0 %1925
        %1927 = vadd.xlane.f32.xlu0 %v1755
        %v1928 = vpop.xlane.xlu0 %1927
        %1929 = vadd.xlane.f32.xlu0 %v1756
        %v1930 = vpop.xlane.xlu0 %1929
        %1931 = vadd.xlane.f32.xlu0 %v1757
        %v1932 = vpop.xlane.xlu0 %1931
        %1933 = vadd.xlane.f32.xlu0 %v1758
        %v1934 = vpop.xlane.xlu0 %1933
        %1935 = vadd.xlane.f32.xlu0 %v1759
        %v1936 = vpop.xlane.xlu0 %1935
        %1937 = vadd.xlane.f32.xlu0 %v1760
        %v1938 = vpop.xlane.xlu0 %1937
        %1939 = vadd.xlane.f32.xlu0 %v1761
        %v1940 = vpop.xlane.xlu0 %1939
        %1941 = vadd.xlane.f32.xlu0 %v1762
        %v1942 = vpop.xlane.xlu0 %1941
        %1943 = vadd.xlane.f32.xlu0 %v1763
        %v1944 = vpop.xlane.xlu0 %1943
        %1945 = vadd.xlane.f32.xlu0 %v1764
        %v1946 = vpop.xlane.xlu0 %1945
        %1947 = vadd.xlane.f32.xlu0 %v1765
        %v1948 = vpop.xlane.xlu0 %1947
        %1949 = vadd.xlane.f32.xlu0 %v1766
        %v1950 = vpop.xlane.xlu0 %1949
        %1951 = vadd.xlane.f32.xlu0 %v1767
        %v1952 = vpop.xlane.xlu0 %1951
        %1953 = vadd.xlane.f32.xlu0 %v1768
        %v1954 = vpop.xlane.xlu0 %1953
        %1955 = vadd.xlane.f32.xlu0 %v1769
        %v1956 = vpop.xlane.xlu0 %1955
        %1957 = vadd.xlane.f32.xlu0 %v1770
        %v1958 = vpop.xlane.xlu0 %1957
        %1959 = vadd.xlane.f32.xlu0 %v1771
        %v1960 = vpop.xlane.xlu0 %1959
        %1961 = vadd.xlane.f32.xlu0 %v1772
        %v1962 = vpop.xlane.xlu0 %1961
        %1963 = vadd.xlane.f32.xlu0 %v1773
        %v1964 = vpop.xlane.xlu0 %1963
        %1965 = vadd.xlane.f32.xlu0 %v1774
        %v1966 = vpop.xlane.xlu0 %1965
        %v1967 = vadd.f32 %v1904, 0.0
        %v1968 = vadd.f32 %v1906, 0.0
        %v1969 = vadd.f32 %v1908, 0.0
        %v1970 = vadd.f32 %v1910, 0.0
        %v1971 = vadd.f32 %v1912, 0.0
        %v1972 = vadd.f32 %v1914, 0.0
        %v1973 = vadd.f32 %v1916, 0.0
        %v1974 = vadd.f32 %v1918, 0.0
        %v1975 = vadd.f32 %v1920, 0.0
        %v1976 = vadd.f32 %v1922, 0.0
        %v1977 = vadd.f32 %v1924, 0.0
        %v1978 = vadd.f32 %v1926, 0.0
        %v1979 = vadd.f32 %v1928, 0.0
        %v1980 = vadd.f32 %v1930, 0.0
        %v1981 = vadd.f32 %v1932, 0.0
        %v1982 = vadd.f32 %v1934, 0.0
        %v1983 = vadd.f32 %v1936, 0.0
        %v1984 = vadd.f32 %v1938, 0.0
        %v1985 = vadd.f32 %v1940, 0.0
        %v1986 = vadd.f32 %v1942, 0.0
        %v1987 = vadd.f32 %v1944, 0.0
        %v1988 = vadd.f32 %v1946, 0.0
        %v1989 = vadd.f32 %v1948, 0.0
        %v1990 = vadd.f32 %v1950, 0.0
        %v1991 = vadd.f32 %v1952, 0.0
        %v1992 = vadd.f32 %v1954, 0.0
        %v1993 = vadd.f32 %v1956, 0.0
        %v1994 = vadd.f32 %v1958, 0.0
        %v1995 = vadd.f32 %v1960, 0.0
        %v1996 = vadd.f32 %v1962, 0.0
        %v1997 = vadd.f32 %v1964, 0.0
        %v1998 = vadd.f32 %v1966, 0.0
        %v1999 = vld [vmem:[#allocation10] sm:$0xff]
        %v2000 = vld [vmem:[#allocation10 + $0x8] sm:$0xff]
        %v2001 = vld [vmem:[#allocation10 + $0x10] sm:$0xff]
        %v2002 = vld [vmem:[#allocation10 + $0x18] sm:$0xff]
        %v2003 = vld [vmem:[#allocation10 + $0x20] sm:$0xff]
        %v2004 = vld [vmem:[#allocation10 + $0x28] sm:$0xff]
        %v2005 = vld [vmem:[#allocation10 + $0x30] sm:$0xff]
        %v2006 = vld [vmem:[#allocation10 + $0x38] sm:$0xff]
        %v2007 = vld [vmem:[#allocation10 + $0x40] sm:$0xff]
        %v2008 = vld [vmem:[#allocation10 + $0x48] sm:$0xff]
        %v2009 = vld [vmem:[#allocation10 + $0x50] sm:$0xff]
        %v2010 = vld [vmem:[#allocation10 + $0x58] sm:$0xff]
        %v2011 = vld [vmem:[#allocation10 + $0x60] sm:$0xff]
        %v2012 = vld [vmem:[#allocation10 + $0x68] sm:$0xff]
        %v2013 = vld [vmem:[#allocation10 + $0x70] sm:$0xff]
        %v2014 = vld [vmem:[#allocation10 + $0x78] sm:$0xff]
        %v2015 = vld [vmem:[#allocation5 + $0x6] sm:$0x1]
        %v2016 = vlaneseq
        %v2017 = vshrl.u32 %v2016, 7
        %v2018 = vsub.s32 0, %v2017
        %v2019 = vrot.slane %v2015, %v2018
        %2020 = vmatprep.subr.mxu0 0.0
        %2021 = vmatpush1.msra.mxu0 %v2014
        %2022 = vmatprep.subr.mxu0 0.0
        %2023 = vmatpush1.msra.mxu0 %v2013
        %2024 = vmatprep.subr.mxu0 0.0
        %2025 = vmatpush1.msra.mxu0 %v2012
        %2026 = vmatprep.subr.mxu0 0.0
        %2027 = vmatpush1.msra.mxu0 %v2011
        %2028 = vmatprep.subr.mxu0 0.0
        %2029 = vmatpush1.msra.mxu0 %v2010
        %2030 = vmatprep.subr.mxu0 0.0
        %2031 = vmatpush1.msra.mxu0 %v2009
        %2032 = vmatprep.subr.mxu0 0.0
        %2033 = vmatpush1.msra.mxu0 %v2008
        %2034 = vmatprep.subr.mxu0 0.0
        %2035 = vmatpush1.msra.mxu0 %v2007
        %2036 = vmatprep.subr.mxu0 0.0
        %2037 = vmatpush1.msra.mxu0 %v2006
        %2038 = vmatprep.subr.mxu0 0.0
        %2039 = vmatpush1.msra.mxu0 %v2005
        %2040 = vmatprep.subr.mxu0 0.0
        %2041 = vmatpush1.msra.mxu0 %v2004
        %2042 = vmatprep.subr.mxu0 0.0
        %2043 = vmatpush1.msra.mxu0 %v2003
        %2044 = vmatprep.subr.mxu0 0.0
        %2045 = vmatpush1.msra.mxu0 %v2002
        %2046 = vmatprep.subr.mxu0 0.0
        %2047 = vmatpush1.msra.mxu0 %v2001
        %2048 = vmatprep.subr.mxu0 0.0
        %2049 = vmatpush1.msra.mxu0 %v2000
        %2050 = vmatprep.subr.mxu0 0.0
        %2051 = vmatpush1.msra.mxu0 %v1999
        %2052 = vmatprep.subr.mxu0 0.0
        %2053 = vmatpush2.msra.mxu0 0.0
        %2054 = vmatprep.subr.mxu0 0.0
        %2055 = vmatpush2.msra.mxu0 0.0
        %2056 = vmatprep.subr.mxu0 0.0
        %2057 = vmatpush2.msra.mxu0 0.0
        %2058 = vmatprep.subr.mxu0 0.0
        %2059 = vmatpush2.msra.mxu0 0.0
        %2060 = vmatprep.subr.mxu0 0.0
        %2061 = vmatpush2.msra.mxu0 0.0
        %2062 = vmatprep.subr.mxu0 0.0
        %2063 = vmatpush2.msra.mxu0 0.0
        %2064 = vmatprep.subr.mxu0 0.0
        %2065 = vmatpush2.msra.mxu0 0.0
        %2066 = vmatprep.subr.mxu0 0.0
        %2067 = vmatpush2.msra.mxu0 0.0
        %2068 = vmatprep.subr.mxu0 0.0
        %2069 = vmatpush2.msra.mxu0 0.0
        %2070 = vmatprep.subr.mxu0 0.0
        %2071 = vmatpush2.msra.mxu0 0.0
        %2072 = vmatprep.subr.mxu0 0.0
        %2073 = vmatpush2.msra.mxu0 0.0
        %2074 = vmatprep.subr.mxu0 0.0
        %2075 = vmatpush2.msra.mxu0 0.0
        %2076 = vmatprep.subr.mxu0 0.0
        %2077 = vmatpush2.msra.mxu0 0.0
        %2078 = vmatprep.subr.mxu0 0.0
        %2079 = vmatpush2.msra.mxu0 0.0
        %2080 = vmatprep.subr.mxu0 0.0
        %2081 = vmatpush2.msra.mxu0 0.0
        %2082 = vmatprep.subr.mxu0 0.0
        %2083 = vmatpush2.msra.mxu0 0.0
        %2084 = vmatprep.mubr.f32.mxu0 0.0
        %2085 = vmatmul.mubr.f32.gmra.mxu0 %v1871
        %v2086 = vpop.f32.mrf.mxu0
        %v2087 = vadd.f32 %v2019, %v2086
        %v2088 = vpop.f32.mrf.mxu0
        %2089 = vmatprep.mubr.f32.mxu0 0.0
        %2090 = vmatmul.mubr.f32.gmra.mxu0 %v1872
        %v2091 = vpop.f32.mrf.mxu0
        %v2092 = vadd.f32 %v2019, %v2091
        %v2093 = vpop.f32.mrf.mxu0
        %2094 = vmatprep.mubr.f32.mxu0 0.0
        %2095 = vmatmul.mubr.f32.gmra.mxu0 %v1873
        %v2096 = vpop.f32.mrf.mxu0
        %v2097 = vadd.f32 %v2019, %v2096
        %v2098 = vpop.f32.mrf.mxu0
        %2099 = vmatprep.mubr.f32.mxu0 0.0
        %2100 = vmatmul.mubr.f32.gmra.mxu0 %v1874
        %v2101 = vpop.f32.mrf.mxu0
        %v2102 = vadd.f32 %v2019, %v2101
        %v2103 = vpop.f32.mrf.mxu0
        %2104 = vmatprep.mubr.f32.mxu0 0.0
        %2105 = vmatmul.mubr.f32.gmra.mxu0 %v1875
        %v2106 = vpop.f32.mrf.mxu0
        %v2107 = vadd.f32 %v2019, %v2106
        %v2108 = vpop.f32.mrf.mxu0
        %2109 = vmatprep.mubr.f32.mxu0 0.0
        %2110 = vmatmul.mubr.f32.gmra.mxu0 %v1876
        %v2111 = vpop.f32.mrf.mxu0
        %v2112 = vadd.f32 %v2019, %v2111
        %v2113 = vpop.f32.mrf.mxu0
        %2114 = vmatprep.mubr.f32.mxu0 0.0
        %2115 = vmatmul.mubr.f32.gmra.mxu0 %v1877
        %v2116 = vpop.f32.mrf.mxu0
        %v2117 = vadd.f32 %v2019, %v2116
        %v2118 = vpop.f32.mrf.mxu0
        %2119 = vmatprep.mubr.f32.mxu0 0.0
        %2120 = vmatmul.mubr.f32.gmra.mxu0 %v1878
        %v2121 = vpop.f32.mrf.mxu0
        %v2122 = vadd.f32 %v2019, %v2121
        %v2123 = vpop.f32.mrf.mxu0
        %2124 = vmatprep.mubr.f32.mxu0 0.0
        %2125 = vmatmul.mubr.f32.gmra.mxu0 %v1879
        %v2126 = vpop.f32.mrf.mxu0
        %v2127 = vadd.f32 %v2019, %v2126
        %v2128 = vpop.f32.mrf.mxu0
        %2129 = vmatprep.mubr.f32.mxu0 0.0
        %2130 = vmatmul.mubr.f32.gmra.mxu0 %v1880
        %v2131 = vpop.f32.mrf.mxu0
        %v2132 = vadd.f32 %v2019, %v2131
        %v2133 = vpop.f32.mrf.mxu0
        %2134 = vmatprep.mubr.f32.mxu0 0.0
        %2135 = vmatmul.mubr.f32.gmra.mxu0 %v1881
        %v2136 = vpop.f32.mrf.mxu0
        %v2137 = vadd.f32 %v2019, %v2136
        %v2138 = vpop.f32.mrf.mxu0
        %2139 = vmatprep.mubr.f32.mxu0 0.0
        %2140 = vmatmul.mubr.f32.gmra.mxu0 %v1882
        %v2141 = vpop.f32.mrf.mxu0
        %v2142 = vadd.f32 %v2019, %v2141
        %v2143 = vpop.f32.mrf.mxu0
        %2144 = vmatprep.mubr.f32.mxu0 0.0
        %2145 = vmatmul.mubr.f32.gmra.mxu0 %v1883
        %v2146 = vpop.f32.mrf.mxu0
        %v2147 = vadd.f32 %v2019, %v2146
        %v2148 = vpop.f32.mrf.mxu0
        %2149 = vmatprep.mubr.f32.mxu0 0.0
        %2150 = vmatmul.mubr.f32.gmra.mxu0 %v1884
        %v2151 = vpop.f32.mrf.mxu0
        %v2152 = vadd.f32 %v2019, %v2151
        %v2153 = vpop.f32.mrf.mxu0
        %2154 = vmatprep.mubr.f32.mxu0 0.0
        %2155 = vmatmul.mubr.f32.gmra.mxu0 %v1885
        %v2156 = vpop.f32.mrf.mxu0
        %v2157 = vadd.f32 %v2019, %v2156
        %v2158 = vpop.f32.mrf.mxu0
        %2159 = vmatprep.mubr.f32.mxu0 0.0
        %2160 = vmatmul.mubr.f32.gmra.mxu0 %v1886
        %v2161 = vpop.f32.mrf.mxu0
        %v2162 = vadd.f32 %v2019, %v2161
        %v2163 = vpop.f32.mrf.mxu0
        %2164 = vmatprep.mubr.f32.mxu0 0.0
        %2165 = vmatmul.mubr.f32.gmra.mxu0 %v1887
        %v2166 = vpop.f32.mrf.mxu0
        %v2167 = vadd.f32 %v2019, %v2166
        %v2168 = vpop.f32.mrf.mxu0
        %2169 = vmatprep.mubr.f32.mxu0 0.0
        %2170 = vmatmul.mubr.f32.gmra.mxu0 %v1888
        %v2171 = vpop.f32.mrf.mxu0
        %v2172 = vadd.f32 %v2019, %v2171
        %v2173 = vpop.f32.mrf.mxu0
        %2174 = vmatprep.mubr.f32.mxu0 0.0
        %2175 = vmatmul.mubr.f32.gmra.mxu0 %v1889
        %v2176 = vpop.f32.mrf.mxu0
        %v2177 = vadd.f32 %v2019, %v2176
        %v2178 = vpop.f32.mrf.mxu0
        %2179 = vmatprep.mubr.f32.mxu0 0.0
        %2180 = vmatmul.mubr.f32.gmra.mxu0 %v1890
        %v2181 = vpop.f32.mrf.mxu0
        %v2182 = vadd.f32 %v2019, %v2181
        %v2183 = vpop.f32.mrf.mxu0
        %2184 = vmatprep.mubr.f32.mxu0 0.0
        %2185 = vmatmul.mubr.f32.gmra.mxu0 %v1891
        %v2186 = vpop.f32.mrf.mxu0
        %v2187 = vadd.f32 %v2019, %v2186
        %v2188 = vpop.f32.mrf.mxu0
        %2189 = vmatprep.mubr.f32.mxu0 0.0
        %2190 = vmatmul.mubr.f32.gmra.mxu0 %v1892
        %v2191 = vpop.f32.mrf.mxu0
        %v2192 = vadd.f32 %v2019, %v2191
        %v2193 = vpop.f32.mrf.mxu0
        %2194 = vmatprep.mubr.f32.mxu0 0.0
        %2195 = vmatmul.mubr.f32.gmra.mxu0 %v1893
        %v2196 = vpop.f32.mrf.mxu0
        %v2197 = vadd.f32 %v2019, %v2196
        %v2198 = vpop.f32.mrf.mxu0
        %2199 = vmatprep.mubr.f32.mxu0 0.0
        %2200 = vmatmul.mubr.f32.gmra.mxu0 %v1894
        %v2201 = vpop.f32.mrf.mxu0
        %v2202 = vadd.f32 %v2019, %v2201
        %v2203 = vpop.f32.mrf.mxu0
        %2204 = vmatprep.mubr.f32.mxu0 0.0
        %2205 = vmatmul.mubr.f32.gmra.mxu0 %v1895
        %v2206 = vpop.f32.mrf.mxu0
        %v2207 = vadd.f32 %v2019, %v2206
        %v2208 = vpop.f32.mrf.mxu0
        %2209 = vmatprep.mubr.f32.mxu0 0.0
        %2210 = vmatmul.mubr.f32.gmra.mxu0 %v1896
        %v2211 = vpop.f32.mrf.mxu0
        %v2212 = vadd.f32 %v2019, %v2211
        %v2213 = vpop.f32.mrf.mxu0
        %2214 = vmatprep.mubr.f32.mxu0 0.0
        %2215 = vmatmul.mubr.f32.gmra.mxu0 %v1897
        %v2216 = vpop.f32.mrf.mxu0
        %v2217 = vadd.f32 %v2019, %v2216
        %v2218 = vpop.f32.mrf.mxu0
        %2219 = vmatprep.mubr.f32.mxu0 0.0
        %2220 = vmatmul.mubr.f32.gmra.mxu0 %v1898
        %v2221 = vpop.f32.mrf.mxu0
        %v2222 = vadd.f32 %v2019, %v2221
        %v2223 = vpop.f32.mrf.mxu0
        %2224 = vmatprep.mubr.f32.mxu0 0.0
        %2225 = vmatmul.mubr.f32.gmra.mxu0 %v1899
        %v2226 = vpop.f32.mrf.mxu0
        %v2227 = vadd.f32 %v2019, %v2226
        %v2228 = vpop.f32.mrf.mxu0
        %2229 = vmatprep.mubr.f32.mxu0 0.0
        %2230 = vmatmul.mubr.f32.gmra.mxu0 %v1900
        %v2231 = vpop.f32.mrf.mxu0
        %v2232 = vadd.f32 %v2019, %v2231
        %v2233 = vpop.f32.mrf.mxu0
        %2234 = vmatprep.mubr.f32.mxu0 0.0
        %2235 = vmatmul.mubr.f32.gmra.mxu0 %v1901
        %v2236 = vpop.f32.mrf.mxu0
        %v2237 = vadd.f32 %v2019, %v2236
        %v2238 = vpop.f32.mrf.mxu0
        %2239 = vmatprep.mubr.f32.mxu0 0.0
        %2240 = vmatmul.mubr.f32.gmra.mxu0 %v1902
        %v2241 = vpop.f32.mrf.mxu0
        %v2242 = vadd.f32 %v2019, %v2241
        %v2243 = vpop.f32.mrf.mxu0
        %2244 = vdwg.mxu0
        %v2245 = vlaneseq
        %v2246 = vand.u32 %v2245, 127
        %vm2247 = vcmp.eq.s32.totalorder %v2246, 8
        %v2248 = vsel %vm2247, %v1967, %v2087
        %v2249 = vsel %vm2247, %v1968, %v2092
        %v2250 = vsel %vm2247, %v1969, %v2097
        %v2251 = vsel %vm2247, %v1970, %v2102
        %v2252 = vsel %vm2247, %v1971, %v2107
        %v2253 = vsel %vm2247, %v1972, %v2112
        %v2254 = vsel %vm2247, %v1973, %v2117
        %v2255 = vsel %vm2247, %v1974, %v2122
        %v2256 = vsel %vm2247, %v1975, %v2127
        %v2257 = vsel %vm2247, %v1976, %v2132
        %v2258 = vsel %vm2247, %v1977, %v2137
        %v2259 = vsel %vm2247, %v1978, %v2142
        %v2260 = vsel %vm2247, %v1979, %v2147
        %v2261 = vsel %vm2247, %v1980, %v2152
        %v2262 = vsel %vm2247, %v1981, %v2157
        %v2263 = vsel %vm2247, %v1982, %v2162
        %v2264 = vsel %vm2247, %v1983, %v2167
        %v2265 = vsel %vm2247, %v1984, %v2172
        %v2266 = vsel %vm2247, %v1985, %v2177
        %v2267 = vsel %vm2247, %v1986, %v2182
        %v2268 = vsel %vm2247, %v1987, %v2187
        %v2269 = vsel %vm2247, %v1988, %v2192
        %v2270 = vsel %vm2247, %v1989, %v2197
        %v2271 = vsel %vm2247, %v1990, %v2202
        %v2272 = vsel %vm2247, %v1991, %v2207
        %v2273 = vsel %vm2247, %v1992, %v2212
        %v2274 = vsel %vm2247, %v1993, %v2217
        %v2275 = vsel %vm2247, %v1994, %v2222
        %v2276 = vsel %vm2247, %v1995, %v2227
        %v2277 = vsel %vm2247, %v1996, %v2232
        %v2278 = vsel %vm2247, %v1997, %v2237
        %v2279 = vsel %vm2247, %v1998, %v2242
        %2280 = vst [vmem:[%s298] sm:$0xff] %v2248
        %2281 = vst [vmem:[%s298 + $0x8] sm:$0xff] %v2249
        %2282 = vst [vmem:[%s298 + $0x10] sm:$0xff] %v2250
        %2283 = vst [vmem:[%s298 + $0x18] sm:$0xff] %v2251
        %2284 = vst [vmem:[%s298 + $0x20] sm:$0xff] %v2252
        %2285 = vst [vmem:[%s298 + $0x28] sm:$0xff] %v2253
        %2286 = vst [vmem:[%s298 + $0x30] sm:$0xff] %v2254
        %2287 = vst [vmem:[%s298 + $0x38] sm:$0xff] %v2255
        %2288 = vst [vmem:[%s298 + $0x40] sm:$0xff] %v2256
        %2289 = vst [vmem:[%s298 + $0x48] sm:$0xff] %v2257
        %2290 = vst [vmem:[%s298 + $0x50] sm:$0xff] %v2258
        %2291 = vst [vmem:[%s298 + $0x58] sm:$0xff] %v2259
        %2292 = vst [vmem:[%s298 + $0x60] sm:$0xff] %v2260
        %2293 = vst [vmem:[%s298 + $0x68] sm:$0xff] %v2261
        %2294 = vst [vmem:[%s298 + $0x70] sm:$0xff] %v2262
        %2295 = vst [vmem:[%s298 + $0x78] sm:$0xff] %v2263
        %2296 = vst [vmem:[%s298 + $0x80] sm:$0xff] %v2264
        %2297 = vst [vmem:[%s298 + $0x88] sm:$0xff] %v2265
        %2298 = vst [vmem:[%s298 + $0x90] sm:$0xff] %v2266
        %2299 = vst [vmem:[%s298 + $0x98] sm:$0xff] %v2267
        %2300 = vst [vmem:[%s298 + $0xa0] sm:$0xff] %v2268
        %2301 = vst [vmem:[%s298 + $0xa8] sm:$0xff] %v2269
        %2302 = vst [vmem:[%s298 + $0xb0] sm:$0xff] %v2270
        %2303 = vst [vmem:[%s298 + $0xb8] sm:$0xff] %v2271
        %2304 = vst [vmem:[%s298 + $0xc0] sm:$0xff] %v2272
        %2305 = vst [vmem:[%s298 + $0xc8] sm:$0xff] %v2273
        %2306 = vst [vmem:[%s298 + $0xd0] sm:$0xff] %v2274
        %2307 = vst [vmem:[%s298 + $0xd8] sm:$0xff] %v2275
        %2308 = vst [vmem:[%s298 + $0xe0] sm:$0xff] %v2276
        %2309 = vst [vmem:[%s298 + $0xe8] sm:$0xff] %v2277
        %2310 = vst [vmem:[%s298 + $0xf0] sm:$0xff] %v2278
        %2311 = vst [vmem:[%s298 + $0xf8] sm:$0xff] %v2279
        %s2312 = sand.u32 %s142, 1
        %s2313 = scalar_lea.sflag [#allocation4], %s2312
        %s2314 = sand.u32 %s142, 1
        %s2315 = smul.addr %s2314, 256
        %s2316 = scalar_lea.vmem [#allocation11], %s2315
        // Predicated region
        $region61: #{tpu_custom_call.1} parent=39 // pred_check
          %p2317 = pneg %p152
        $region62: #{tpu_custom_call.1} parent=39 // pred_check_branch
          %2319 = sbr.rel (%p2317) target = $region64
        $region63: #{tpu_custom_call.1} parent=39 // pred_region
          %s2320 = smul.u32 32, %s24
          %s2322 = ssub.s32 4096, 4096
          %2323 = vsyncadd %s2313, %s2322
          %s2324 = smul.addr %s2320, 128
          %s2325 = scalar_lea.hbm %s5, %s2324
          %s2326 = sshll.u32 %s2316, 4
          %s2327 = int_to_ptr.vmem [resolvable:$true] %s2326
          %2332 = dma.vmem_to_hbm [thread:$0]  %s2327, 4096, %s2325, %s2313, 128, 128, 8
        $region64: #{tpu_custom_call.1} parent=39 // pred_fallthru
          _
      $region40: #{tpu_custom_call.1} parent=5 // pred_fallthru
        _
      %p2333 = scmp.le.s32.totalorder 2, %s19
      // Predicated region
      $region65: #{tpu_custom_call.1} parent=5 // pred_check
        %p2334 = pneg %p2333
      $region66: #{tpu_custom_call.1} parent=5 // pred_check_branch
        %2336 = sbr.rel (%p2334) target = $region68
      $region67: #{tpu_custom_call.1} parent=5 // pred_region
        %s2337 = ssub.s32 %s19, 2
        // Predicated region
        $region69: #{tpu_custom_call.1} parent=67 // pred_check
          %p2338 = pneg %p158
        $region70: #{tpu_custom_call.1} parent=67 // pred_check_branch
          %2340 = sbr.rel (%p2338) target = $region72
        $region71: #{tpu_custom_call.1} parent=67 // pred_region
          %s2341 = sand.u32 %s143, 1
          %s2342 = scalar_lea.sflag [#allocation4], %s2341
          %s2343 = sand.u32 %s143, 1
          %s2344 = smul.addr %s2343, 256
          %s2345 = scalar_lea.vmem [#allocation11], %s2344
          %2346 = dma.done %s2342, 4096
        $region72: #{tpu_custom_call.1} parent=67 // pred_fallthru
          _
      $region68: #{tpu_custom_call.1} parent=5 // pred_fallthru
        _
    $region6: #{tpu_custom_call.1} parent=1 // loop_footer
      %s23 = sadd.s32 1, %s19
    $region7: #{tpu_custom_call.1} parent=1 // loop_footer_branch
      %18 = sbr.rel target = $region3
    $region8: #{tpu_custom_call.1} parent=1 // loop_exit
      _
    %2347 = vsyncpa [#allocation3], 1
    %s2348 = scalar_lea.sflag [#allocation3], 1
    %2349 = vsyncpa %s2348, 1
    %2350 = vsyncpa [#allocation6], 1
    %2351 = vsyncpa [#allocation9], 1
    %2352 = vsyncpa [#allocation4], 1
    %s2353 = scalar_lea.sflag [#allocation4], 1
    %2354 = vsyncpa %s2353, 1

</llo_original>
